<compile_context>
chip_gen: v6e
topology: v6e:2x2x1
jax: 0.10.0
libtpu: 0.0.40
codegen_flags: <defaults>
</compile_context>

<pallas_src>
import jax
import jax.numpy as jnp
from jax.experimental import pallas as pl
from jax.experimental.pallas import tpu as pltpu

IN_FEATS = 590   # Linear(590, 256)
H1 = 256
H2 = 128
SUB = 256        # rows per inner sub-block (bounds h1/h2 live ranges)
MAX_TB = 2048    # batch tile; multiple of SUB; ~4.6 MiB per x buffer at f32


def _round_up(n, m):
    return ((n + m - 1) // m) * m


def _make_kernel(nsub, sub):
    def kernel(x_ref, w1_ref, b1_ref, w2t_ref, b2c_ref, w3c_ref, b3_ref, o_ref):
        # x_ref: (TB, 590) f32      o_ref: (1, nsub, SUB) f32 (lane-dense rows)
        for s in range(nsub):                       # static unroll, nsub <= 8
            xs = x_ref[pl.ds(s * sub, sub), :]                       # (SUB, 590)
            # Layer 1 (MXU): (SUB,590) @ (590,256); ragged K edge masked by Mosaic.
            h1 = jnp.dot(xs, w1_ref[...], preferred_element_type=jnp.float32)
            h1 = jnp.maximum(h1 + b1_ref[...], 0.0)                  # (SUB, 256)
            # Switch to batch-on-lanes (aligned XLU transpose) so the final scalar
            # per row lands lane-dense in the output block.
            h1t = h1.T                                               # (256, SUB)
            # Layer 2 (MXU, transposed): (128,256) @ (256,SUB)
            h2t = jnp.dot(w2t_ref[...], h1t, preferred_element_type=jnp.float32)
            h2t = jnp.maximum(h2t + b2c_ref[...], 0.0)               # (128, SUB)
            # Layer 3 (N=1): VPU multiply + sublane reduction, no N=1 MXU matmul.
            row = jnp.sum(h2t * w3c_ref[...], axis=0, keepdims=True) + b3_ref[...]
            o_ref[:, s, :] = row                                     # (1, SUB)
    return kernel


def spectral_regressor(x, params):
    """x: (B, 590) float32. Returns (B,) float32."""
    w1, b1, w2, b2, w3, b3 = params
    B = x.shape[0]

    if B <= SUB:
        # Tiny batch: one tile; pad rows up to SUB once (< 1 MB, off the hot path).
        TB = SUB
        x_in = x if B == TB else jnp.pad(x, ((0, TB - B), (0, 0)))
    else:
        # No padding of x: boundary batch tile is a partial Pallas block whose extra
        # rows are garbage but confined to discarded output positions.
        # TB targets >= 2 tiles so both v7x TensorCores engage; capped at MAX_TB.
        TB = min(MAX_TB, _round_up(pl.cdiv(B, 2), SUB))
        x_in = x
    n_tiles = pl.cdiv(x_in.shape[0], TB)
    nsub = TB // SUB

    w2t = w2.T               # (128, 256) for the transposed layer-2 matmul
    b2c = b2.reshape(H2, 1)  # (128, 1)
    b3r = b3.reshape(1, 1)   # (1, 1)

    const = lambda shape: pl.BlockSpec(shape, lambda i: (0,) * len(shape))

    out = pl.pallas_call(
        _make_kernel(nsub, SUB),
        out_shape=jax.ShapeDtypeStruct((n_tiles, nsub, SUB), jnp.float32),
        grid=(n_tiles,),
        in_specs=[
            pl.BlockSpec((TB, IN_FEATS), lambda i: (i, 0)),  # x: streamed per tile
            const((IN_FEATS, H1)),                           # w1: VMEM-resident
            const((1, H1)),                                  # b1
            const((H2, H1)),                                 # w2^T
            const((H2, 1)),                                  # b2 as a column
            const((H2, 1)),                                  # w3 as a column
            const((1, 1)),                                   # b3
        ],
        out_specs=pl.BlockSpec((1, nsub, SUB), lambda i: (i, 0, 0)),
        compiler_params=pltpu.CompilerParams(
            dimension_semantics=("parallel",),
            vmem_limit_bytes=32 << 20,
        ),
    )(x_in, w1, b1, w2t, b2c, w3, b3r)
    # TODO(synk): optionally stream x / weights as bf16 (f32 accumulation) for ~2x HBM
    # and ~4x MXU headroom if the accuracy budget allows.
    return out.reshape(-1)[:B]  # drop tile/boundary padding + squeeze(-1)


def init_params(key):
    """Deterministic init mirroring nn.Linear default (uniform +/- 1/sqrt(fan_in))."""
    dims = [(IN_FEATS, H1), (H1, H2), (H2, 1)]
    params = []
    for (fan_in, fan_out) in dims:
        key, kw, kb = jax.random.split(key, 3)
        bound = 1.0 / jnp.sqrt(fan_in)
        w = jax.random.uniform(kw, (fan_in, fan_out), jnp.float32, -bound, bound)
        b = jax.random.uniform(kb, (1, fan_out), jnp.float32, -bound, bound)
        params += [w, b]
    return tuple(params)


def reference(x, params):
    w1, b1, w2, b2, w3, b3 = params
    h = jnp.maximum(x @ w1 + b1, 0.0)
    h = jnp.maximum(h @ w2 + b2, 0.0)
    return (h @ w3 + b3)[:, 0]


if __name__ == "__main__":
    key = jax.random.PRNGKey(0)
    key, k1, k2 = jax.random.split(key, 3)
    params = init_params(key)

    # Small batch (single tile) and a multi-tile batch with a ragged boundary tile.
    for B, kx in ((8, k1), (600, k2)):
        x = jax.random.normal(kx, (B, IN_FEATS), jnp.float32)
        y = jax.block_until_ready(spectral_regressor(x, params))
        y_ref = reference(x, params)
        assert y.shape == (B,)
        assert jnp.allclose(y, y_ref, atol=5e-4, rtol=5e-4), float(jnp.max(jnp.abs(y - y_ref)))
    print("KERNEL_OK")
</pallas_src>

<mosaic_0001>
module attributes {stable_mosaic.version = 11 : i64} {
  func.func @kernel(%arg0: i32, %arg1: memref<256x590xf32, #tpu.memory_space<vmem>>, %arg2: memref<590x256xf32, #tpu.memory_space<vmem>>, %arg3: memref<1x256xf32, #tpu.memory_space<vmem>>, %arg4: memref<128x256xf32, #tpu.memory_space<vmem>>, %arg5: memref<128x1xf32, #tpu.memory_space<vmem>>, %arg6: memref<128x1xf32, #tpu.memory_space<vmem>>, %arg7: memref<1x1xf32, #tpu.memory_space<vmem>>, %arg8: memref<1x1x256xf32, #tpu.memory_space<vmem>>) attributes {dimension_semantics = [#tpu.dimension_semantics<parallel>], iteration_bounds = array<i64: 1>, scalar_prefetch = 0 : i64, scratch_operands = 0 : i64, tpu.core_type = #tpu.core_type<tc>, window_params = [{transform_indices = @transform_0, window_bounds = array<i64: 256, 590>}, {pipeline_mode = #tpu.pipeline_mode<synchronous>, transform_indices = @transform_1, window_bounds = array<i64: 590, 256>}, {pipeline_mode = #tpu.pipeline_mode<synchronous>, transform_indices = @transform_2, window_bounds = array<i64: 1, 256>}, {pipeline_mode = #tpu.pipeline_mode<synchronous>, transform_indices = @transform_3, window_bounds = array<i64: 128, 256>}, {pipeline_mode = #tpu.pipeline_mode<synchronous>, transform_indices = @transform_4, window_bounds = array<i64: 128, 1>}, {pipeline_mode = #tpu.pipeline_mode<synchronous>, transform_indices = @transform_5, window_bounds = array<i64: 128, 1>}, {pipeline_mode = #tpu.pipeline_mode<synchronous>, transform_indices = @transform_6, window_bounds = array<i64: 1, 1>}, {transform_indices = @transform_7, window_bounds = array<i64: 1, 1, 256>}]} {
    %c0 = arith.constant 0 : index
    %c0_0 = arith.constant 0 : index
    %0 = vector.load %arg1[%c0, %c0_0] : memref<256x590xf32, #tpu.memory_space<vmem>>, vector<256x590xf32>
    %c0_1 = arith.constant 0 : index
    %c0_2 = arith.constant 0 : index
    %1 = vector.load %arg2[%c0_1, %c0_2] : memref<590x256xf32, #tpu.memory_space<vmem>>, vector<590x256xf32>
    %cst = arith.constant dense<0.000000e+00> : vector<256x256xf32>
    %2 = tpu.matmul %0, %1, %cst {dimension_numbers = #tpu.dot_dimension_numbers<[1], [0], [0], [1], [0, 0, 1, 1], [], []>} : vector<256x590xf32>, vector<590x256xf32>, vector<256x256xf32> -> vector<256x256xf32>
    %c0_3 = arith.constant 0 : index
    %c0_4 = arith.constant 0 : index
    %3 = vector.load %arg3[%c0_3, %c0_4] : memref<1x256xf32, #tpu.memory_space<vmem>>, vector<1x256xf32>
    %4 = vector.broadcast %3 : vector<1x256xf32> to vector<256x256xf32>
    %5 = arith.addf %2, %4 : vector<256x256xf32>
    %cst_5 = arith.constant 0.000000e+00 : f32
    %6 = vector.broadcast %cst_5 : f32 to vector<256x256xf32>
    %7 = arith.maximumf %5, %6 : vector<256x256xf32>
    %8 = tpu.transpose %7, [1, 0] : vector<256x256xf32> -> vector<256x256xf32>
    %c0_6 = arith.constant 0 : index
    %c0_7 = arith.constant 0 : index
    %9 = vector.load %arg4[%c0_6, %c0_7] : memref<128x256xf32, #tpu.memory_space<vmem>>, vector<128x256xf32>
    %cst_8 = arith.constant dense<0.000000e+00> : vector<128x256xf32>
    %10 = tpu.matmul %9, %8, %cst_8 {dimension_numbers = #tpu.dot_dimension_numbers<[1], [0], [0], [1], [0, 0, 1, 1], [], []>} : vector<128x256xf32>, vector<256x256xf32>, vector<128x256xf32> -> vector<128x256xf32>
    %c0_9 = arith.constant 0 : index
    %c0_10 = arith.constant 0 : index
    %11 = vector.load %arg5[%c0_9, %c0_10] : memref<128x1xf32, #tpu.memory_space<vmem>>, vector<128x1xf32>
    %12 = vector.broadcast %11 : vector<128x1xf32> to vector<128x256xf32>
    %13 = arith.addf %10, %12 : vector<128x256xf32>
    %cst_11 = arith.constant 0.000000e+00 : f32
    %14 = vector.broadcast %cst_11 : f32 to vector<128x256xf32>
    %15 = arith.maximumf %13, %14 : vector<128x256xf32>
    %c0_12 = arith.constant 0 : index
    %c0_13 = arith.constant 0 : index
    %16 = vector.load %arg6[%c0_12, %c0_13] : memref<128x1xf32, #tpu.memory_space<vmem>>, vector<128x1xf32>
    %17 = vector.broadcast %16 : vector<128x1xf32> to vector<128x256xf32>
    %18 = arith.mulf %15, %17 : vector<128x256xf32>
    %cst_14 = arith.constant dense<0.000000e+00> : vector<256xf32>
    %19 = vector.multi_reduction <add>, %18, %cst_14 [0] : vector<128x256xf32> to vector<256xf32>
    %20 = vector.shape_cast %19 : vector<256xf32> to vector<1x256xf32>
    %c0_15 = arith.constant 0 : index
    %c0_16 = arith.constant 0 : index
    %21 = vector.load %arg7[%c0_15, %c0_16] : memref<1x1xf32, #tpu.memory_space<vmem>>, vector<1x1xf32>
    %22 = vector.broadcast %21 : vector<1x1xf32> to vector<1x256xf32>
    %23 = arith.addf %20, %22 : vector<1x256xf32>
    %c0_17 = arith.constant 0 : index
    %c0_18 = arith.constant 0 : index
    %c0_19 = arith.constant 0 : index
    %24 = vector.load %arg8[%c0_17, %c0_18, %c0_19] : memref<1x1x256xf32, #tpu.memory_space<vmem>>, vector<1x1x256xf32>
    %25 = vector.shape_cast %24 : vector<1x1x256xf32> to vector<1x256xf32>
    %26 = vector.shape_cast %23 : vector<1x256xf32> to vector<1x1x256xf32>
    tpu.vector_store %arg8[%c0_17, %c0_18, %c0_19], %26 {strides = array<i32>} : memref<1x1x256xf32, #tpu.memory_space<vmem>>, vector<1x1x256xf32>,
    return
  }
  func.func @transform_0(%arg0: i32) -> (i32, i32) {
    %c0_i32 = arith.constant 0 : i32
    %c0_i32_0 = arith.constant 0 : i32
    return %arg0, %c0_i32 : i32, i32
  }
  func.func @transform_1(%arg0: i32) -> (i32, i32) {
    %c0_i32 = arith.constant 0 : i32
    %c0_i32_0 = arith.constant 0 : i32
    %c0_i32_1 = arith.constant 0 : i32
    return %c0_i32, %c0_i32_0 : i32, i32
  }
  func.func @transform_2(%arg0: i32) -> (i32, i32) {
    %c0_i32 = arith.constant 0 : i32
    %c0_i32_0 = arith.constant 0 : i32
    %c0_i32_1 = arith.constant 0 : i32
    return %c0_i32, %c0_i32_0 : i32, i32
  }
  func.func @transform_3(%arg0: i32) -> (i32, i32) {
    %c0_i32 = arith.constant 0 : i32
    %c0_i32_0 = arith.constant 0 : i32
    %c0_i32_1 = arith.constant 0 : i32
    return %c0_i32, %c0_i32_0 : i32, i32
  }
  func.func @transform_4(%arg0: i32) -> (i32, i32) {
    %c0_i32 = arith.constant 0 : i32
    %c0_i32_0 = arith.constant 0 : i32
    %c0_i32_1 = arith.constant 0 : i32
    return %c0_i32, %c0_i32_0 : i32, i32
  }
  func.func @transform_5(%arg0: i32) -> (i32, i32) {
    %c0_i32 = arith.constant 0 : i32
    %c0_i32_0 = arith.constant 0 : i32
    %c0_i32_1 = arith.constant 0 : i32
    return %c0_i32, %c0_i32_0 : i32, i32
  }
  func.func @transform_6(%arg0: i32) -> (i32, i32) {
    %c0_i32 = arith.constant 0 : i32
    %c0_i32_0 = arith.constant 0 : i32
    %c0_i32_1 = arith.constant 0 : i32
    return %c0_i32, %c0_i32_0 : i32, i32
  }
  func.func @transform_7(%arg0: i32) -> (i32, i32, i32) {
    %c0_i32 = arith.constant 0 : i32
    %c0_i32_0 = arith.constant 0 : i32
    %c0_i32_1 = arith.constant 0 : i32
    return %arg0, %c0_i32, %c0_i32_0 : i32, i32, i32
  }
}

</mosaic_0001>

<llo_original>
// kernel: tpu_custom_call.1
$region0: #{tpu_custom_call.1}
  #allocation0 [shape = 'u32[]', space=smem, size = 0x4, offset = 0x4, fixed_abs, tag = 'smem constant byte address 0x4 - core index']
  #allocation1 [shape = 'u32[144,128]{1,0:T(1,128)}', space=vmem, size = 0x12000, scoped, tag = 'internal scratch']
  #allocation2 [shape = 'f32[1,1]{1,0:T(1,128)S(1)}', space=vmem, size = 0x200, scoped, tag = 'scoped memory for tpu_custom_call.1']
  %s0 = inlined_call_operand.vmem [shape: f32[256,590], index: 0, kind: input, shape index: {}]
  %s1 = inlined_call_operand.vmem [shape: f32[590,256], index: 1, kind: input, shape index: {}]
  %s2 = inlined_call_operand.vmem [shape: f32[1,256], index: 2, kind: input, shape index: {}]
  %s3 = inlined_call_operand.vmem [shape: f32[128,256], index: 3, kind: input, shape index: {}]
  %s4 = inlined_call_operand.vmem [shape: f32[128,1], index: 4, kind: input, shape index: {}]
  %s5 = inlined_call_operand.vmem [shape: f32[128,1], index: 5, kind: input, shape index: {}]
  %s6 = inlined_call_operand.<no memory space> [shape: f32[1,1], index: 6, kind: input, shape index: {}]
  %s7 = inlined_call_operand.hbm [shape: f32[1,1,256], index: 7, kind: output, shape index: {}]
  %s8 = sld [smem:[#allocation0]]
  $region38: #{tpu_custom_call.1} parent=0
    _
  %s10 = ssub.s32 1, %s8
  %s11 = scalar_select 0, %s10, %s8
  %v12 = vstv %s6
  %13 = vst [vmem:[#allocation2] sm:$0x1] %v12
  $region1: #{tpu_custom_call.1} parent=0
    #allocation3 [shape = 'u8[1024]{0}', space=vmem, size = 0x400, scoped, tag = 'output window, operand 0, single buffered']
    #allocation4 [shape = 's32[1]{0}', space=sflag, size = 0x4, scoped, tag = 'scoped memory for tpu_custom_call.1']
    %14 = vsyncpa [#allocation4], 0
    // Predicated region
    $region2: #{tpu_custom_call.1} parent=1 // pred_check
      _
    $region3: #{tpu_custom_call.1} parent=1 // pred_check_branch
      %16 = sbr.rel (0) target = $region5
    $region4: #{tpu_custom_call.1} parent=1 // pred_region
      _
    $region5: #{tpu_custom_call.1} parent=1 // pred_fallthru
      _
    // Predicated region
    $region6: #{tpu_custom_call.1} parent=1 // pred_check
      _
    $region7: #{tpu_custom_call.1} parent=1 // pred_check_branch
      %18 = sbr.rel (0) target = $region9
    $region8: #{tpu_custom_call.1} parent=1 // pred_region
      _
    $region9: #{tpu_custom_call.1} parent=1 // pred_fallthru
      _
    // Predicated region
    $region10: #{tpu_custom_call.1} parent=1 // pred_check
      _
    $region11: #{tpu_custom_call.1} parent=1 // pred_check_branch
      %20 = sbr.rel (0) target = $region13
    $region12: #{tpu_custom_call.1} parent=1 // pred_region
      _
    $region13: #{tpu_custom_call.1} parent=1 // pred_fallthru
      _
    // Predicated region
    $region14: #{tpu_custom_call.1} parent=1 // pred_check
      _
    $region15: #{tpu_custom_call.1} parent=1 // pred_check_branch
      %22 = sbr.rel (0) target = $region17
    $region16: #{tpu_custom_call.1} parent=1 // pred_region
      _
    $region17: #{tpu_custom_call.1} parent=1 // pred_fallthru
      _
    // Predicated region
    $region18: #{tpu_custom_call.1} parent=1 // pred_check
      _
    $region19: #{tpu_custom_call.1} parent=1 // pred_check_branch
      %24 = sbr.rel (0) target = $region21
    $region20: #{tpu_custom_call.1} parent=1 // pred_region
      _
    $region21: #{tpu_custom_call.1} parent=1 // pred_fallthru
      _
    // Predicated region
    $region22: #{tpu_custom_call.1} parent=1 // pred_check
      _
    $region23: #{tpu_custom_call.1} parent=1 // pred_check_branch
      %26 = sbr.rel (0) target = $region25
    $region24: #{tpu_custom_call.1} parent=1 // pred_region
      _
    $region25: #{tpu_custom_call.1} parent=1 // pred_fallthru
      _
    // Predicated region
    $region26: #{tpu_custom_call.1} parent=1 // pred_check
      _
    $region27: #{tpu_custom_call.1} parent=1 // pred_check_branch
      %28 = sbr.rel (0) target = $region29
    $region28: #{tpu_custom_call.1} parent=1 // pred_region
      _
    $region29: #{tpu_custom_call.1} parent=1 // pred_fallthru
      _
    %v29 = vld [vmem:[%s0] sm:$0xff]
    %v30 = vld [vmem:[%s0 + $0x8] sm:$0xff]
    %v31 = vld [vmem:[%s0 + $0x10] sm:$0xff]
    %v32 = vld [vmem:[%s0 + $0x18] sm:$0xff]
    %v33 = vld [vmem:[%s0 + $0x20] sm:$0xff]
    %v34 = vld [vmem:[%s0 + $0x28] sm:$0xff]
    %v35 = vld [vmem:[%s0 + $0x30] sm:$0xff]
    %v36 = vld [vmem:[%s0 + $0x38] sm:$0xff]
    %v37 = vld [vmem:[%s0 + $0x40] sm:$0xff]
    %v38 = vld [vmem:[%s0 + $0x48] sm:$0xff]
    %v39 = vld [vmem:[%s0 + $0x50] sm:$0xff]
    %v40 = vld [vmem:[%s0 + $0x58] sm:$0xff]
    %v41 = vld [vmem:[%s0 + $0x60] sm:$0xff]
    %v42 = vld [vmem:[%s0 + $0x68] sm:$0xff]
    %v43 = vld [vmem:[%s0 + $0x70] sm:$0xff]
    %v44 = vld [vmem:[%s0 + $0x78] sm:$0xff]
    %v45 = vld [vmem:[%s0 + $0x80] sm:$0xff]
    %v46 = vld [vmem:[%s0 + $0x88] sm:$0xff]
    %v47 = vld [vmem:[%s0 + $0x90] sm:$0xff]
    %v48 = vld [vmem:[%s0 + $0x98] sm:$0xff]
    %v49 = vld [vmem:[%s0 + $0xa0] sm:$0xff]
    %v50 = vld [vmem:[%s0 + $0xa8] sm:$0xff]
    %v51 = vld [vmem:[%s0 + $0xb0] sm:$0xff]
    %v52 = vld [vmem:[%s0 + $0xb8] sm:$0xff]
    %v53 = vld [vmem:[%s0 + $0xc0] sm:$0xff]
    %v54 = vld [vmem:[%s0 + $0xc8] sm:$0xff]
    %v55 = vld [vmem:[%s0 + $0xd0] sm:$0xff]
    %v56 = vld [vmem:[%s0 + $0xd8] sm:$0xff]
    %v57 = vld [vmem:[%s0 + $0xe0] sm:$0xff]
    %v58 = vld [vmem:[%s0 + $0xe8] sm:$0xff]
    %v59 = vld [vmem:[%s0 + $0xf0] sm:$0xff]
    %v60 = vld [vmem:[%s0 + $0xf8] sm:$0xff]
    %v61 = vld [vmem:[%s0 + $0x100] sm:$0xff]
    %v62 = vld [vmem:[%s0 + $0x108] sm:$0xff]
    %v63 = vld [vmem:[%s0 + $0x110] sm:$0xff]
    %v64 = vld [vmem:[%s0 + $0x118] sm:$0xff]
    %v65 = vld [vmem:[%s0 + $0x120] sm:$0xff]
    %v66 = vld [vmem:[%s0 + $0x128] sm:$0xff]
    %v67 = vld [vmem:[%s0 + $0x130] sm:$0xff]
    %v68 = vld [vmem:[%s0 + $0x138] sm:$0xff]
    %v69 = vld [vmem:[%s0 + $0x140] sm:$0xff]
    %v70 = vld [vmem:[%s0 + $0x148] sm:$0xff]
    %v71 = vld [vmem:[%s0 + $0x150] sm:$0xff]
    %v72 = vld [vmem:[%s0 + $0x158] sm:$0xff]
    %v73 = vld [vmem:[%s0 + $0x160] sm:$0xff]
    %v74 = vld [vmem:[%s0 + $0x168] sm:$0xff]
    %v75 = vld [vmem:[%s0 + $0x170] sm:$0xff]
    %v76 = vld [vmem:[%s0 + $0x178] sm:$0xff]
    %v77 = vld [vmem:[%s0 + $0x180] sm:$0xff]
    %v78 = vld [vmem:[%s0 + $0x188] sm:$0xff]
    %v79 = vld [vmem:[%s0 + $0x190] sm:$0xff]
    %v80 = vld [vmem:[%s0 + $0x198] sm:$0xff]
    %v81 = vld [vmem:[%s0 + $0x1a0] sm:$0xff]
    %v82 = vld [vmem:[%s0 + $0x1a8] sm:$0xff]
    %v83 = vld [vmem:[%s0 + $0x1b0] sm:$0xff]
    %v84 = vld [vmem:[%s0 + $0x1b8] sm:$0xff]
    %v85 = vld [vmem:[%s0 + $0x1c0] sm:$0xff]
    %v86 = vld [vmem:[%s0 + $0x1c8] sm:$0xff]
    %v87 = vld [vmem:[%s0 + $0x1d0] sm:$0xff]
    %v88 = vld [vmem:[%s0 + $0x1d8] sm:$0xff]
    %v89 = vld [vmem:[%s0 + $0x1e0] sm:$0xff]
    %v90 = vld [vmem:[%s0 + $0x1e8] sm:$0xff]
    %v91 = vld [vmem:[%s0 + $0x1f0] sm:$0xff]
    %v92 = vld [vmem:[%s0 + $0x1f8] sm:$0xff]
    %v93 = vld [vmem:[%s0 + $0x200] sm:$0xff]
    %v94 = vld [vmem:[%s0 + $0x208] sm:$0xff]
    %v95 = vld [vmem:[%s0 + $0x210] sm:$0xff]
    %v96 = vld [vmem:[%s0 + $0x218] sm:$0xff]
    %v97 = vld [vmem:[%s0 + $0x220] sm:$0xff]
    %v98 = vld [vmem:[%s0 + $0x228] sm:$0xff]
    %v99 = vld [vmem:[%s0 + $0x230] sm:$0xff]
    %v100 = vld [vmem:[%s0 + $0x238] sm:$0xff]
    %v101 = vld [vmem:[%s0 + $0x240] sm:$0xff]
    %v102 = vld [vmem:[%s0 + $0x248] sm:$0xff]
    %v103 = vld [vmem:[%s0 + $0x250] sm:$0xff]
    %v104 = vld [vmem:[%s0 + $0x258] sm:$0xff]
    %v105 = vld [vmem:[%s0 + $0x260] sm:$0xff]
    %v106 = vld [vmem:[%s0 + $0x268] sm:$0xff]
    %v107 = vld [vmem:[%s0 + $0x270] sm:$0xff]
    %v108 = vld [vmem:[%s0 + $0x278] sm:$0xff]
    %v109 = vld [vmem:[%s0 + $0x280] sm:$0xff]
    %v110 = vld [vmem:[%s0 + $0x288] sm:$0xff]
    %v111 = vld [vmem:[%s0 + $0x290] sm:$0xff]
    %v112 = vld [vmem:[%s0 + $0x298] sm:$0xff]
    %v113 = vld [vmem:[%s0 + $0x2a0] sm:$0xff]
    %v114 = vld [vmem:[%s0 + $0x2a8] sm:$0xff]
    %v115 = vld [vmem:[%s0 + $0x2b0] sm:$0xff]
    %v116 = vld [vmem:[%s0 + $0x2b8] sm:$0xff]
    %v117 = vld [vmem:[%s0 + $0x2c0] sm:$0xff]
    %v118 = vld [vmem:[%s0 + $0x2c8] sm:$0xff]
    %v119 = vld [vmem:[%s0 + $0x2d0] sm:$0xff]
    %v120 = vld [vmem:[%s0 + $0x2d8] sm:$0xff]
    %v121 = vld [vmem:[%s0 + $0x2e0] sm:$0xff]
    %v122 = vld [vmem:[%s0 + $0x2e8] sm:$0xff]
    %v123 = vld [vmem:[%s0 + $0x2f0] sm:$0xff]
    %v124 = vld [vmem:[%s0 + $0x2f8] sm:$0xff]
    %v125 = vld [vmem:[%s0 + $0x300] sm:$0xff]
    %v126 = vld [vmem:[%s0 + $0x308] sm:$0xff]
    %v127 = vld [vmem:[%s0 + $0x310] sm:$0xff]
    %v128 = vld [vmem:[%s0 + $0x318] sm:$0xff]
    %v129 = vld [vmem:[%s0 + $0x320] sm:$0xff]
    %v130 = vld [vmem:[%s0 + $0x328] sm:$0xff]
    %v131 = vld [vmem:[%s0 + $0x330] sm:$0xff]
    %v132 = vld [vmem:[%s0 + $0x338] sm:$0xff]
    %v133 = vld [vmem:[%s0 + $0x340] sm:$0xff]
    %v134 = vld [vmem:[%s0 + $0x348] sm:$0xff]
    %v135 = vld [vmem:[%s0 + $0x350] sm:$0xff]
    %v136 = vld [vmem:[%s0 + $0x358] sm:$0xff]
    %v137 = vld [vmem:[%s0 + $0x360] sm:$0xff]
    %v138 = vld [vmem:[%s0 + $0x368] sm:$0xff]
    %v139 = vld [vmem:[%s0 + $0x370] sm:$0xff]
    %v140 = vld [vmem:[%s0 + $0x378] sm:$0xff]
    %v141 = vld [vmem:[%s0 + $0x380] sm:$0xff]
    %v142 = vld [vmem:[%s0 + $0x388] sm:$0xff]
    %v143 = vld [vmem:[%s0 + $0x390] sm:$0xff]
    %v144 = vld [vmem:[%s0 + $0x398] sm:$0xff]
    %v145 = vld [vmem:[%s0 + $0x3a0] sm:$0xff]
    %v146 = vld [vmem:[%s0 + $0x3a8] sm:$0xff]
    %v147 = vld [vmem:[%s0 + $0x3b0] sm:$0xff]
    %v148 = vld [vmem:[%s0 + $0x3b8] sm:$0xff]
    %v149 = vld [vmem:[%s0 + $0x3c0] sm:$0xff]
    %v150 = vld [vmem:[%s0 + $0x3c8] sm:$0xff]
    %v151 = vld [vmem:[%s0 + $0x3d0] sm:$0xff]
    %v152 = vld [vmem:[%s0 + $0x3d8] sm:$0xff]
    %v153 = vld [vmem:[%s0 + $0x3e0] sm:$0xff]
    %v154 = vld [vmem:[%s0 + $0x3e8] sm:$0xff]
    %v155 = vld [vmem:[%s0 + $0x3f0] sm:$0xff]
    %v156 = vld [vmem:[%s0 + $0x3f8] sm:$0xff]
    %v157 = vld [vmem:[%s0 + $0x400] sm:$0xff]
    %v158 = vld [vmem:[%s0 + $0x408] sm:$0xff]
    %v159 = vld [vmem:[%s0 + $0x410] sm:$0xff]
    %v160 = vld [vmem:[%s0 + $0x418] sm:$0xff]
    %v161 = vld [vmem:[%s0 + $0x420] sm:$0xff]
    %v162 = vld [vmem:[%s0 + $0x428] sm:$0xff]
    %v163 = vld [vmem:[%s0 + $0x430] sm:$0xff]
    %v164 = vld [vmem:[%s0 + $0x438] sm:$0xff]
    %v165 = vld [vmem:[%s0 + $0x440] sm:$0xff]
    %v166 = vld [vmem:[%s0 + $0x448] sm:$0xff]
    %v167 = vld [vmem:[%s0 + $0x450] sm:$0xff]
    %v168 = vld [vmem:[%s0 + $0x458] sm:$0xff]
    %v169 = vld [vmem:[%s0 + $0x460] sm:$0xff]
    %v170 = vld [vmem:[%s0 + $0x468] sm:$0xff]
    %v171 = vld [vmem:[%s0 + $0x470] sm:$0xff]
    %v172 = vld [vmem:[%s0 + $0x478] sm:$0xff]
    %v173 = vld [vmem:[%s0 + $0x480] sm:$0xff]
    %v174 = vld [vmem:[%s0 + $0x488] sm:$0xff]
    %v175 = vld [vmem:[%s0 + $0x490] sm:$0xff]
    %v176 = vld [vmem:[%s0 + $0x498] sm:$0xff]
    %v177 = vld [vmem:[%s0 + $0x4a0] sm:$0xff]
    %v178 = vld [vmem:[%s0 + $0x4a8] sm:$0xff]
    %v179 = vld [vmem:[%s0 + $0x4b0] sm:$0xff]
    %v180 = vld [vmem:[%s0 + $0x4b8] sm:$0xff]
    %v181 = vld [vmem:[%s0 + $0x4c0] sm:$0xff]
    %v182 = vld [vmem:[%s0 + $0x4c8] sm:$0xff]
    %v183 = vld [vmem:[%s0 + $0x4d0] sm:$0xff]
    %v184 = vld [vmem:[%s0 + $0x4d8] sm:$0xff]
    %v185 = vld [vmem:[%s0 + $0x4e0] sm:$0xff]
    %v186 = vld [vmem:[%s0 + $0x4e8] sm:$0xff]
    %v187 = vld [vmem:[%s0 + $0x4f0] sm:$0xff]
    %v188 = vld [vmem:[%s0 + $0x4f8] sm:$0xff]
    %v189 = vld [vmem:[%s1] sm:$0xff]
    %v190 = vld [vmem:[%s1 + $0x8] sm:$0xff]
    %v191 = vld [vmem:[%s1 + $0x10] sm:$0xff]
    %v192 = vld [vmem:[%s1 + $0x18] sm:$0xff]
    %v193 = vld [vmem:[%s1 + $0x20] sm:$0xff]
    %v194 = vld [vmem:[%s1 + $0x28] sm:$0xff]
    %v195 = vld [vmem:[%s1 + $0x30] sm:$0xff]
    %v196 = vld [vmem:[%s1 + $0x38] sm:$0xff]
    %v197 = vld [vmem:[%s1 + $0x40] sm:$0xff]
    %v198 = vld [vmem:[%s1 + $0x48] sm:$0xff]
    %v199 = vld [vmem:[%s1 + $0x50] sm:$0xff]
    %v200 = vld [vmem:[%s1 + $0x58] sm:$0xff]
    %v201 = vld [vmem:[%s1 + $0x60] sm:$0xff]
    %v202 = vld [vmem:[%s1 + $0x68] sm:$0xff]
    %v203 = vld [vmem:[%s1 + $0x70] sm:$0xff]
    %v204 = vld [vmem:[%s1 + $0x78] sm:$0xff]
    %v205 = vld [vmem:[%s1 + $0x80] sm:$0xff]
    %v206 = vld [vmem:[%s1 + $0x88] sm:$0xff]
    %v207 = vld [vmem:[%s1 + $0x90] sm:$0xff]
    %v208 = vld [vmem:[%s1 + $0x98] sm:$0xff]
    %v209 = vld [vmem:[%s1 + $0xa0] sm:$0xff]
    %v210 = vld [vmem:[%s1 + $0xa8] sm:$0xff]
    %v211 = vld [vmem:[%s1 + $0xb0] sm:$0xff]
    %v212 = vld [vmem:[%s1 + $0xb8] sm:$0xff]
    %v213 = vld [vmem:[%s1 + $0xc0] sm:$0xff]
    %v214 = vld [vmem:[%s1 + $0xc8] sm:$0xff]
    %v215 = vld [vmem:[%s1 + $0xd0] sm:$0xff]
    %v216 = vld [vmem:[%s1 + $0xd8] sm:$0xff]
    %v217 = vld [vmem:[%s1 + $0xe0] sm:$0xff]
    %v218 = vld [vmem:[%s1 + $0xe8] sm:$0xff]
    %v219 = vld [vmem:[%s1 + $0xf0] sm:$0xff]
    %v220 = vld [vmem:[%s1 + $0xf8] sm:$0xff]
    %v221 = vld [vmem:[%s1 + $0x100] sm:$0xff]
    %v222 = vld [vmem:[%s1 + $0x108] sm:$0xff]
    %v223 = vld [vmem:[%s1 + $0x110] sm:$0xff]
    %v224 = vld [vmem:[%s1 + $0x118] sm:$0xff]
    %v225 = vld [vmem:[%s1 + $0x120] sm:$0xff]
    %v226 = vld [vmem:[%s1 + $0x128] sm:$0xff]
    %v227 = vld [vmem:[%s1 + $0x130] sm:$0xff]
    %v228 = vld [vmem:[%s1 + $0x138] sm:$0xff]
    %v229 = vld [vmem:[%s1 + $0x140] sm:$0xff]
    %v230 = vld [vmem:[%s1 + $0x148] sm:$0xff]
    %v231 = vld [vmem:[%s1 + $0x150] sm:$0xff]
    %v232 = vld [vmem:[%s1 + $0x158] sm:$0xff]
    %v233 = vld [vmem:[%s1 + $0x160] sm:$0xff]
    %v234 = vld [vmem:[%s1 + $0x168] sm:$0xff]
    %v235 = vld [vmem:[%s1 + $0x170] sm:$0xff]
    %v236 = vld [vmem:[%s1 + $0x178] sm:$0xff]
    %v237 = vld [vmem:[%s1 + $0x180] sm:$0xff]
    %v238 = vld [vmem:[%s1 + $0x188] sm:$0xff]
    %v239 = vld [vmem:[%s1 + $0x190] sm:$0xff]
    %v240 = vld [vmem:[%s1 + $0x198] sm:$0xff]
    %v241 = vld [vmem:[%s1 + $0x1a0] sm:$0xff]
    %v242 = vld [vmem:[%s1 + $0x1a8] sm:$0xff]
    %v243 = vld [vmem:[%s1 + $0x1b0] sm:$0xff]
    %v244 = vld [vmem:[%s1 + $0x1b8] sm:$0xff]
    %v245 = vld [vmem:[%s1 + $0x1c0] sm:$0xff]
    %v246 = vld [vmem:[%s1 + $0x1c8] sm:$0xff]
    %v247 = vld [vmem:[%s1 + $0x1d0] sm:$0xff]
    %v248 = vld [vmem:[%s1 + $0x1d8] sm:$0xff]
    %v249 = vld [vmem:[%s1 + $0x1e0] sm:$0xff]
    %v250 = vld [vmem:[%s1 + $0x1e8] sm:$0xff]
    %v251 = vld [vmem:[%s1 + $0x1f0] sm:$0xff]
    %v252 = vld [vmem:[%s1 + $0x1f8] sm:$0xff]
    %v253 = vld [vmem:[%s1 + $0x200] sm:$0xff]
    %v254 = vld [vmem:[%s1 + $0x208] sm:$0xff]
    %v255 = vld [vmem:[%s1 + $0x210] sm:$0xff]
    %v256 = vld [vmem:[%s1 + $0x218] sm:$0xff]
    %v257 = vld [vmem:[%s1 + $0x220] sm:$0xff]
    %v258 = vld [vmem:[%s1 + $0x228] sm:$0xff]
    %v259 = vld [vmem:[%s1 + $0x230] sm:$0xff]
    %v260 = vld [vmem:[%s1 + $0x238] sm:$0xff]
    %v261 = vld [vmem:[%s1 + $0x240] sm:$0xff]
    %v262 = vld [vmem:[%s1 + $0x248] sm:$0xff]
    %v263 = vld [vmem:[%s1 + $0x250] sm:$0xff]
    %v264 = vld [vmem:[%s1 + $0x258] sm:$0xff]
    %v265 = vld [vmem:[%s1 + $0x260] sm:$0xff]
    %v266 = vld [vmem:[%s1 + $0x268] sm:$0xff]
    %v267 = vld [vmem:[%s1 + $0x270] sm:$0xff]
    %v268 = vld [vmem:[%s1 + $0x278] sm:$0xff]
    %v269 = vld [vmem:[%s1 + $0x280] sm:$0xff]
    %v270 = vld [vmem:[%s1 + $0x288] sm:$0xff]
    %v271 = vld [vmem:[%s1 + $0x290] sm:$0xff]
    %v272 = vld [vmem:[%s1 + $0x298] sm:$0xff]
    %v273 = vld [vmem:[%s1 + $0x2a0] sm:$0xff]
    %v274 = vld [vmem:[%s1 + $0x2a8] sm:$0xff]
    %v275 = vld [vmem:[%s1 + $0x2b0] sm:$0xff]
    %v276 = vld [vmem:[%s1 + $0x2b8] sm:$0xff]
    %v277 = vld [vmem:[%s1 + $0x2c0] sm:$0xff]
    %v278 = vld [vmem:[%s1 + $0x2c8] sm:$0xff]
    %v279 = vld [vmem:[%s1 + $0x2d0] sm:$0xff]
    %v280 = vld [vmem:[%s1 + $0x2d8] sm:$0xff]
    %v281 = vld [vmem:[%s1 + $0x2e0] sm:$0xff]
    %v282 = vld [vmem:[%s1 + $0x2e8] sm:$0xff]
    %v283 = vld [vmem:[%s1 + $0x2f0] sm:$0xff]
    %v284 = vld [vmem:[%s1 + $0x2f8] sm:$0xff]
    %v285 = vld [vmem:[%s1 + $0x300] sm:$0xff]
    %v286 = vld [vmem:[%s1 + $0x308] sm:$0xff]
    %v287 = vld [vmem:[%s1 + $0x310] sm:$0xff]
    %v288 = vld [vmem:[%s1 + $0x318] sm:$0xff]
    %v289 = vld [vmem:[%s1 + $0x320] sm:$0xff]
    %v290 = vld [vmem:[%s1 + $0x328] sm:$0xff]
    %v291 = vld [vmem:[%s1 + $0x330] sm:$0xff]
    %v292 = vld [vmem:[%s1 + $0x338] sm:$0xff]
    %v293 = vld [vmem:[%s1 + $0x340] sm:$0xff]
    %v294 = vld [vmem:[%s1 + $0x348] sm:$0xff]
    %v295 = vld [vmem:[%s1 + $0x350] sm:$0xff]
    %v296 = vld [vmem:[%s1 + $0x358] sm:$0xff]
    %v297 = vld [vmem:[%s1 + $0x360] sm:$0xff]
    %v298 = vld [vmem:[%s1 + $0x368] sm:$0xff]
    %v299 = vld [vmem:[%s1 + $0x370] sm:$0xff]
    %v300 = vld [vmem:[%s1 + $0x378] sm:$0xff]
    %v301 = vld [vmem:[%s1 + $0x380] sm:$0xff]
    %v302 = vld [vmem:[%s1 + $0x388] sm:$0xff]
    %v303 = vld [vmem:[%s1 + $0x390] sm:$0xff]
    %v304 = vld [vmem:[%s1 + $0x398] sm:$0xff]
    %v305 = vld [vmem:[%s1 + $0x3a0] sm:$0xff]
    %v306 = vld [vmem:[%s1 + $0x3a8] sm:$0xff]
    %v307 = vld [vmem:[%s1 + $0x3b0] sm:$0xff]
    %v308 = vld [vmem:[%s1 + $0x3b8] sm:$0xff]
    %v309 = vld [vmem:[%s1 + $0x3c0] sm:$0xff]
    %v310 = vld [vmem:[%s1 + $0x3c8] sm:$0xff]
    %v311 = vld [vmem:[%s1 + $0x3d0] sm:$0xff]
    %v312 = vld [vmem:[%s1 + $0x3d8] sm:$0xff]
    %v313 = vld [vmem:[%s1 + $0x3e0] sm:$0xff]
    %v314 = vld [vmem:[%s1 + $0x3e8] sm:$0xff]
    %v315 = vld [vmem:[%s1 + $0x3f0] sm:$0xff]
    %v316 = vld [vmem:[%s1 + $0x3f8] sm:$0xff]
    %v317 = vld [vmem:[%s1 + $0x400] sm:$0xff]
    %v318 = vld [vmem:[%s1 + $0x408] sm:$0xff]
    %v319 = vld [vmem:[%s1 + $0x410] sm:$0xff]
    %v320 = vld [vmem:[%s1 + $0x418] sm:$0xff]
    %v321 = vld [vmem:[%s1 + $0x420] sm:$0xff]
    %v322 = vld [vmem:[%s1 + $0x428] sm:$0xff]
    %v323 = vld [vmem:[%s1 + $0x430] sm:$0xff]
    %v324 = vld [vmem:[%s1 + $0x438] sm:$0xff]
    %v325 = vld [vmem:[%s1 + $0x440] sm:$0xff]
    %v326 = vld [vmem:[%s1 + $0x448] sm:$0xff]
    %v327 = vld [vmem:[%s1 + $0x450] sm:$0xff]
    %v328 = vld [vmem:[%s1 + $0x458] sm:$0xff]
    %v329 = vld [vmem:[%s1 + $0x460] sm:$0xff]
    %v330 = vld [vmem:[%s1 + $0x468] sm:$0xff]
    %v331 = vld [vmem:[%s1 + $0x470] sm:$0xff]
    %v332 = vld [vmem:[%s1 + $0x478] sm:$0xff]
    %v333 = vld [vmem:[%s1 + $0x480] sm:$0xff]
    %v334 = vld [vmem:[%s1 + $0x488] sm:$0xff]
    %v335 = vld [vmem:[%s1 + $0x490] sm:$0x3f]
    %v336 = vld [vmem:[%s1 + $0x498] sm:$0x3f]
    %v337 = vld [vmem:[%s2] sm:$0x3]
    %v339 = vlaneseq
    %v340 = vshrl.u32 %v339, 7
    %v341 = vsub.s32 0, %v340
    %v342 = vrot.slane %v337, %v341
    %v343 = vlaneseq
    %v344 = vshrl.u32 %v343, 7
    %v345 = vsub.s32 1, %v344
    %v346 = vrot.slane %v337, %v345
    %vm349 = vcmask 637952
    %v351 = vsel %vm349, %v33, 0
    %v354 = vsel %vm349, %v38, 0
    %v357 = vsel %vm349, %v43, 0
    %v360 = vsel %vm349, %v48, 0
    %v363 = vsel %vm349, %v53, 0
    %v366 = vsel %vm349, %v58, 0
    %v369 = vsel %vm349, %v63, 0
    %v372 = vsel %vm349, %v68, 0
    %v375 = vsel %vm349, %v73, 0
    %v378 = vsel %vm349, %v78, 0
    %v381 = vsel %vm349, %v83, 0
    %v384 = vsel %vm349, %v88, 0
    %v387 = vsel %vm349, %v93, 0
    %v390 = vsel %vm349, %v98, 0
    %v393 = vsel %vm349, %v103, 0
    %v396 = vsel %vm349, %v108, 0
    %v399 = vsel %vm349, %v113, 0
    %v402 = vsel %vm349, %v118, 0
    %v405 = vsel %vm349, %v123, 0
    %v408 = vsel %vm349, %v128, 0
    %v411 = vsel %vm349, %v133, 0
    %v414 = vsel %vm349, %v138, 0
    %v417 = vsel %vm349, %v143, 0
    %v420 = vsel %vm349, %v148, 0
    %v423 = vsel %vm349, %v153, 0
    %v426 = vsel %vm349, %v158, 0
    %v429 = vsel %vm349, %v163, 0
    %v432 = vsel %vm349, %v168, 0
    %v435 = vsel %vm349, %v173, 0
    %v438 = vsel %vm349, %v178, 0
    %v441 = vsel %vm349, %v183, 0
    %v444 = vsel %vm349, %v188, 0
    %vm446 = vcmask 1045504
    %v448 = vsel %vm446, %v335, 0
    %v451 = vsel %vm446, %v336, 0
    %453 = vmatprep.subr.mxu0 %v220
    %454 = vmatpush1.msra.mxu0 %v219
    %455 = vmatprep.subr.mxu0 %v218
    %456 = vmatpush1.msra.mxu0 %v217
    %457 = vmatprep.subr.mxu0 %v216
    %458 = vmatpush1.msra.mxu0 %v215
    %459 = vmatprep.subr.mxu0 %v214
    %460 = vmatpush1.msra.mxu0 %v213
    %461 = vmatprep.subr.mxu0 %v212
    %462 = vmatpush1.msra.mxu0 %v211
    %463 = vmatprep.subr.mxu0 %v210
    %464 = vmatpush1.msra.mxu0 %v209
    %465 = vmatprep.subr.mxu0 %v208
    %466 = vmatpush1.msra.mxu0 %v207
    %467 = vmatprep.subr.mxu0 %v206
    %468 = vmatpush1.msra.mxu0 %v205
    %469 = vmatprep.subr.mxu0 %v204
    %470 = vmatpush1.msra.mxu0 %v203
    %471 = vmatprep.subr.mxu0 %v202
    %472 = vmatpush1.msra.mxu0 %v201
    %473 = vmatprep.subr.mxu0 %v200
    %474 = vmatpush1.msra.mxu0 %v199
    %475 = vmatprep.subr.mxu0 %v198
    %476 = vmatpush1.msra.mxu0 %v197
    %477 = vmatprep.subr.mxu0 %v196
    %478 = vmatpush1.msra.mxu0 %v195
    %479 = vmatprep.subr.mxu0 %v194
    %480 = vmatpush1.msra.mxu0 %v193
    %481 = vmatprep.subr.mxu0 %v192
    %482 = vmatpush1.msra.mxu0 %v191
    %483 = vmatprep.subr.mxu0 %v190
    %484 = vmatpush1.msra.mxu0 %v189
    %485 = vmatprep.subr.mxu0 %v252
    %486 = vmatpush2.msra.mxu0 %v251
    %487 = vmatprep.subr.mxu0 %v250
    %488 = vmatpush2.msra.mxu0 %v249
    %489 = vmatprep.subr.mxu0 %v248
    %490 = vmatpush2.msra.mxu0 %v247
    %491 = vmatprep.subr.mxu0 %v246
    %492 = vmatpush2.msra.mxu0 %v245
    %493 = vmatprep.subr.mxu0 %v244
    %494 = vmatpush2.msra.mxu0 %v243
    %495 = vmatprep.subr.mxu0 %v242
    %496 = vmatpush2.msra.mxu0 %v241
    %497 = vmatprep.subr.mxu0 %v240
    %498 = vmatpush2.msra.mxu0 %v239
    %499 = vmatprep.subr.mxu0 %v238
    %500 = vmatpush2.msra.mxu0 %v237
    %501 = vmatprep.subr.mxu0 %v236
    %502 = vmatpush2.msra.mxu0 %v235
    %503 = vmatprep.subr.mxu0 %v234
    %504 = vmatpush2.msra.mxu0 %v233
    %505 = vmatprep.subr.mxu0 %v232
    %506 = vmatpush2.msra.mxu0 %v231
    %507 = vmatprep.subr.mxu0 %v230
    %508 = vmatpush2.msra.mxu0 %v229
    %509 = vmatprep.subr.mxu0 %v228
    %510 = vmatpush2.msra.mxu0 %v227
    %511 = vmatprep.subr.mxu0 %v226
    %512 = vmatpush2.msra.mxu0 %v225
    %513 = vmatprep.subr.mxu0 %v224
    %514 = vmatpush2.msra.mxu0 %v223
    %515 = vmatprep.subr.mxu0 %v222
    %516 = vmatpush2.msra.mxu0 %v221
    %517 = vmatprep.mubr.f32.mxu0 %v30
    %518 = vmatmul.mubr.f32.gmra.mxu0 %v29
    %v519 = vpop.f32.mrf.mxu0
    %v520 = vadd.f32 %v342, %v519
    %v521 = vpop.f32.mrf.mxu0
    %v522 = vadd.f32 %v346, %v521
    %523 = vmatprep.mubr.f32.mxu0 %v35
    %524 = vmatmul.mubr.f32.gmra.mxu0 %v34
    %v525 = vpop.f32.mrf.mxu0
    %v526 = vadd.f32 %v342, %v525
    %v527 = vpop.f32.mrf.mxu0
    %v528 = vadd.f32 %v346, %v527
    %529 = vmatprep.mubr.f32.mxu0 %v40
    %530 = vmatmul.mubr.f32.gmra.mxu0 %v39
    %v531 = vpop.f32.mrf.mxu0
    %v532 = vadd.f32 %v342, %v531
    %v533 = vpop.f32.mrf.mxu0
    %v534 = vadd.f32 %v346, %v533
    %535 = vmatprep.mubr.f32.mxu0 %v45
    %536 = vmatmul.mubr.f32.gmra.mxu0 %v44
    %v537 = vpop.f32.mrf.mxu0
    %v538 = vadd.f32 %v342, %v537
    %v539 = vpop.f32.mrf.mxu0
    %v540 = vadd.f32 %v346, %v539
    %541 = vmatprep.mubr.f32.mxu0 %v50
    %542 = vmatmul.mubr.f32.gmra.mxu0 %v49
    %v543 = vpop.f32.mrf.mxu0
    %v544 = vadd.f32 %v342, %v543
    %v545 = vpop.f32.mrf.mxu0
    %v546 = vadd.f32 %v346, %v545
    %547 = vmatprep.mubr.f32.mxu0 %v55
    %548 = vmatmul.mubr.f32.gmra.mxu0 %v54
    %v549 = vpop.f32.mrf.mxu0
    %v550 = vadd.f32 %v342, %v549
    %v551 = vpop.f32.mrf.mxu0
    %v552 = vadd.f32 %v346, %v551
    %553 = vmatprep.mubr.f32.mxu0 %v60
    %554 = vmatmul.mubr.f32.gmra.mxu0 %v59
    %v555 = vpop.f32.mrf.mxu0
    %v556 = vadd.f32 %v342, %v555
    %v557 = vpop.f32.mrf.mxu0
    %v558 = vadd.f32 %v346, %v557
    %559 = vmatprep.mubr.f32.mxu0 %v65
    %560 = vmatmul.mubr.f32.gmra.mxu0 %v64
    %v561 = vpop.f32.mrf.mxu0
    %v562 = vadd.f32 %v342, %v561
    %v563 = vpop.f32.mrf.mxu0
    %v564 = vadd.f32 %v346, %v563
    %565 = vmatprep.mubr.f32.mxu0 %v70
    %566 = vmatmul.mubr.f32.gmra.mxu0 %v69
    %v567 = vpop.f32.mrf.mxu0
    %v568 = vadd.f32 %v342, %v567
    %v569 = vpop.f32.mrf.mxu0
    %v570 = vadd.f32 %v346, %v569
    %571 = vmatprep.mubr.f32.mxu0 %v75
    %572 = vmatmul.mubr.f32.gmra.mxu0 %v74
    %v573 = vpop.f32.mrf.mxu0
    %v574 = vadd.f32 %v342, %v573
    %v575 = vpop.f32.mrf.mxu0
    %v576 = vadd.f32 %v346, %v575
    %577 = vmatprep.mubr.f32.mxu0 %v80
    %578 = vmatmul.mubr.f32.gmra.mxu0 %v79
    %v579 = vpop.f32.mrf.mxu0
    %v580 = vadd.f32 %v342, %v579
    %v581 = vpop.f32.mrf.mxu0
    %v582 = vadd.f32 %v346, %v581
    %583 = vmatprep.mubr.f32.mxu0 %v85
    %584 = vmatmul.mubr.f32.gmra.mxu0 %v84
    %v585 = vpop.f32.mrf.mxu0
    %v586 = vadd.f32 %v342, %v585
    %v587 = vpop.f32.mrf.mxu0
    %v588 = vadd.f32 %v346, %v587
    %589 = vmatprep.mubr.f32.mxu0 %v90
    %590 = vmatmul.mubr.f32.gmra.mxu0 %v89
    %v591 = vpop.f32.mrf.mxu0
    %v592 = vadd.f32 %v342, %v591
    %v593 = vpop.f32.mrf.mxu0
    %v594 = vadd.f32 %v346, %v593
    %595 = vmatprep.mubr.f32.mxu0 %v95
    %596 = vmatmul.mubr.f32.gmra.mxu0 %v94
    %v597 = vpop.f32.mrf.mxu0
    %v598 = vadd.f32 %v342, %v597
    %v599 = vpop.f32.mrf.mxu0
    %v600 = vadd.f32 %v346, %v599
    %601 = vmatprep.mubr.f32.mxu0 %v100
    %602 = vmatmul.mubr.f32.gmra.mxu0 %v99
    %v603 = vpop.f32.mrf.mxu0
    %v604 = vadd.f32 %v342, %v603
    %v605 = vpop.f32.mrf.mxu0
    %v606 = vadd.f32 %v346, %v605
    %607 = vmatprep.mubr.f32.mxu0 %v105
    %608 = vmatmul.mubr.f32.gmra.mxu0 %v104
    %v609 = vpop.f32.mrf.mxu0
    %v610 = vadd.f32 %v342, %v609
    %v611 = vpop.f32.mrf.mxu0
    %v612 = vadd.f32 %v346, %v611
    %613 = vmatprep.mubr.f32.mxu0 %v110
    %614 = vmatmul.mubr.f32.gmra.mxu0 %v109
    %v615 = vpop.f32.mrf.mxu0
    %v616 = vadd.f32 %v342, %v615
    %v617 = vpop.f32.mrf.mxu0
    %v618 = vadd.f32 %v346, %v617
    %619 = vmatprep.mubr.f32.mxu0 %v115
    %620 = vmatmul.mubr.f32.gmra.mxu0 %v114
    %v621 = vpop.f32.mrf.mxu0
    %v622 = vadd.f32 %v342, %v621
    %v623 = vpop.f32.mrf.mxu0
    %v624 = vadd.f32 %v346, %v623
    %625 = vmatprep.mubr.f32.mxu0 %v120
    %626 = vmatmul.mubr.f32.gmra.mxu0 %v119
    %v627 = vpop.f32.mrf.mxu0
    %v628 = vadd.f32 %v342, %v627
    %v629 = vpop.f32.mrf.mxu0
    %v630 = vadd.f32 %v346, %v629
    %631 = vmatprep.mubr.f32.mxu0 %v125
    %632 = vmatmul.mubr.f32.gmra.mxu0 %v124
    %v633 = vpop.f32.mrf.mxu0
    %v634 = vadd.f32 %v342, %v633
    %v635 = vpop.f32.mrf.mxu0
    %v636 = vadd.f32 %v346, %v635
    %637 = vmatprep.mubr.f32.mxu0 %v130
    %638 = vmatmul.mubr.f32.gmra.mxu0 %v129
    %v639 = vpop.f32.mrf.mxu0
    %v640 = vadd.f32 %v342, %v639
    %v641 = vpop.f32.mrf.mxu0
    %v642 = vadd.f32 %v346, %v641
    %643 = vmatprep.mubr.f32.mxu0 %v135
    %644 = vmatmul.mubr.f32.gmra.mxu0 %v134
    %v645 = vpop.f32.mrf.mxu0
    %v646 = vadd.f32 %v342, %v645
    %v647 = vpop.f32.mrf.mxu0
    %v648 = vadd.f32 %v346, %v647
    %649 = vmatprep.mubr.f32.mxu0 %v140
    %650 = vmatmul.mubr.f32.gmra.mxu0 %v139
    %v651 = vpop.f32.mrf.mxu0
    %v652 = vadd.f32 %v342, %v651
    %v653 = vpop.f32.mrf.mxu0
    %v654 = vadd.f32 %v346, %v653
    %655 = vmatprep.mubr.f32.mxu0 %v145
    %656 = vmatmul.mubr.f32.gmra.mxu0 %v144
    %v657 = vpop.f32.mrf.mxu0
    %v658 = vadd.f32 %v342, %v657
    %v659 = vpop.f32.mrf.mxu0
    %v660 = vadd.f32 %v346, %v659
    %661 = vmatprep.mubr.f32.mxu0 %v150
    %662 = vmatmul.mubr.f32.gmra.mxu0 %v149
    %v663 = vpop.f32.mrf.mxu0
    %v664 = vadd.f32 %v342, %v663
    %v665 = vpop.f32.mrf.mxu0
    %v666 = vadd.f32 %v346, %v665
    %667 = vmatprep.mubr.f32.mxu0 %v155
    %668 = vmatmul.mubr.f32.gmra.mxu0 %v154
    %v669 = vpop.f32.mrf.mxu0
    %v670 = vadd.f32 %v342, %v669
    %v671 = vpop.f32.mrf.mxu0
    %v672 = vadd.f32 %v346, %v671
    %673 = vmatprep.mubr.f32.mxu0 %v160
    %674 = vmatmul.mubr.f32.gmra.mxu0 %v159
    %v675 = vpop.f32.mrf.mxu0
    %v676 = vadd.f32 %v342, %v675
    %v677 = vpop.f32.mrf.mxu0
    %v678 = vadd.f32 %v346, %v677
    %679 = vmatprep.mubr.f32.mxu0 %v165
    %680 = vmatmul.mubr.f32.gmra.mxu0 %v164
    %v681 = vpop.f32.mrf.mxu0
    %v682 = vadd.f32 %v342, %v681
    %v683 = vpop.f32.mrf.mxu0
    %v684 = vadd.f32 %v346, %v683
    %685 = vmatprep.mubr.f32.mxu0 %v170
    %686 = vmatmul.mubr.f32.gmra.mxu0 %v169
    %v687 = vpop.f32.mrf.mxu0
    %v688 = vadd.f32 %v342, %v687
    %v689 = vpop.f32.mrf.mxu0
    %v690 = vadd.f32 %v346, %v689
    %691 = vmatprep.mubr.f32.mxu0 %v175
    %692 = vmatmul.mubr.f32.gmra.mxu0 %v174
    %v693 = vpop.f32.mrf.mxu0
    %v694 = vadd.f32 %v342, %v693
    %v695 = vpop.f32.mrf.mxu0
    %v696 = vadd.f32 %v346, %v695
    %697 = vmatprep.mubr.f32.mxu0 %v180
    %698 = vmatmul.mubr.f32.gmra.mxu0 %v179
    %v699 = vpop.f32.mrf.mxu0
    %v700 = vadd.f32 %v342, %v699
    %v701 = vpop.f32.mrf.mxu0
    %v702 = vadd.f32 %v346, %v701
    %703 = vmatprep.mubr.f32.mxu0 %v185
    %704 = vmatmul.mubr.f32.gmra.mxu0 %v184
    %v705 = vpop.f32.mrf.mxu0
    %v706 = vadd.f32 %v342, %v705
    %v707 = vpop.f32.mrf.mxu0
    %v708 = vadd.f32 %v346, %v707
    %709 = vdwg.mxu0
    %710 = vmatprep.subr.mxu0 %v284
    %711 = vmatpush1.msra.mxu0 %v283
    %712 = vmatprep.subr.mxu0 %v282
    %713 = vmatpush1.msra.mxu0 %v281
    %714 = vmatprep.subr.mxu0 %v280
    %715 = vmatpush1.msra.mxu0 %v279
    %716 = vmatprep.subr.mxu0 %v278
    %717 = vmatpush1.msra.mxu0 %v277
    %718 = vmatprep.subr.mxu0 %v276
    %719 = vmatpush1.msra.mxu0 %v275
    %720 = vmatprep.subr.mxu0 %v274
    %721 = vmatpush1.msra.mxu0 %v273
    %722 = vmatprep.subr.mxu0 %v272
    %723 = vmatpush1.msra.mxu0 %v271
    %724 = vmatprep.subr.mxu0 %v270
    %725 = vmatpush1.msra.mxu0 %v269
    %726 = vmatprep.subr.mxu0 %v268
    %727 = vmatpush1.msra.mxu0 %v267
    %728 = vmatprep.subr.mxu0 %v266
    %729 = vmatpush1.msra.mxu0 %v265
    %730 = vmatprep.subr.mxu0 %v264
    %731 = vmatpush1.msra.mxu0 %v263
    %732 = vmatprep.subr.mxu0 %v262
    %733 = vmatpush1.msra.mxu0 %v261
    %734 = vmatprep.subr.mxu0 %v260
    %735 = vmatpush1.msra.mxu0 %v259
    %736 = vmatprep.subr.mxu0 %v258
    %737 = vmatpush1.msra.mxu0 %v257
    %738 = vmatprep.subr.mxu0 %v256
    %739 = vmatpush1.msra.mxu0 %v255
    %740 = vmatprep.subr.mxu0 %v254
    %741 = vmatpush1.msra.mxu0 %v253
    %742 = vmatprep.subr.mxu0 %v316
    %743 = vmatpush2.msra.mxu0 %v315
    %744 = vmatprep.subr.mxu0 %v314
    %745 = vmatpush2.msra.mxu0 %v313
    %746 = vmatprep.subr.mxu0 %v312
    %747 = vmatpush2.msra.mxu0 %v311
    %748 = vmatprep.subr.mxu0 %v310
    %749 = vmatpush2.msra.mxu0 %v309
    %750 = vmatprep.subr.mxu0 %v308
    %751 = vmatpush2.msra.mxu0 %v307
    %752 = vmatprep.subr.mxu0 %v306
    %753 = vmatpush2.msra.mxu0 %v305
    %754 = vmatprep.subr.mxu0 %v304
    %755 = vmatpush2.msra.mxu0 %v303
    %756 = vmatprep.subr.mxu0 %v302
    %757 = vmatpush2.msra.mxu0 %v301
    %758 = vmatprep.subr.mxu0 %v300
    %759 = vmatpush2.msra.mxu0 %v299
    %760 = vmatprep.subr.mxu0 %v298
    %761 = vmatpush2.msra.mxu0 %v297
    %762 = vmatprep.subr.mxu0 %v296
    %763 = vmatpush2.msra.mxu0 %v295
    %764 = vmatprep.subr.mxu0 %v294
    %765 = vmatpush2.msra.mxu0 %v293
    %766 = vmatprep.subr.mxu0 %v292
    %767 = vmatpush2.msra.mxu0 %v291
    %768 = vmatprep.subr.mxu0 %v290
    %769 = vmatpush2.msra.mxu0 %v289
    %770 = vmatprep.subr.mxu0 %v288
    %771 = vmatpush2.msra.mxu0 %v287
    %772 = vmatprep.subr.mxu0 %v286
    %773 = vmatpush2.msra.mxu0 %v285
    %774 = vmatprep.mubr.f32.mxu0 %v32
    %775 = vmatmul.mubr.f32.gmra.mxu0 %v31
    %v776 = vpop.f32.mrf.mxu0
    %v777 = vadd.f32 %v520, %v776
    %v778 = vpop.f32.mrf.mxu0
    %v779 = vadd.f32 %v522, %v778
    %780 = vmatprep.mubr.f32.mxu0 %v37
    %781 = vmatmul.mubr.f32.gmra.mxu0 %v36
    %v782 = vpop.f32.mrf.mxu0
    %v783 = vadd.f32 %v526, %v782
    %v784 = vpop.f32.mrf.mxu0
    %v785 = vadd.f32 %v528, %v784
    %786 = vmatprep.mubr.f32.mxu0 %v42
    %787 = vmatmul.mubr.f32.gmra.mxu0 %v41
    %v788 = vpop.f32.mrf.mxu0
    %v789 = vadd.f32 %v532, %v788
    %v790 = vpop.f32.mrf.mxu0
    %v791 = vadd.f32 %v534, %v790
    %792 = vmatprep.mubr.f32.mxu0 %v47
    %793 = vmatmul.mubr.f32.gmra.mxu0 %v46
    %v794 = vpop.f32.mrf.mxu0
    %v795 = vadd.f32 %v538, %v794
    %v796 = vpop.f32.mrf.mxu0
    %v797 = vadd.f32 %v540, %v796
    %798 = vmatprep.mubr.f32.mxu0 %v52
    %799 = vmatmul.mubr.f32.gmra.mxu0 %v51
    %v800 = vpop.f32.mrf.mxu0
    %v801 = vadd.f32 %v544, %v800
    %v802 = vpop.f32.mrf.mxu0
    %v803 = vadd.f32 %v546, %v802
    %804 = vmatprep.mubr.f32.mxu0 %v57
    %805 = vmatmul.mubr.f32.gmra.mxu0 %v56
    %v806 = vpop.f32.mrf.mxu0
    %v807 = vadd.f32 %v550, %v806
    %v808 = vpop.f32.mrf.mxu0
    %v809 = vadd.f32 %v552, %v808
    %810 = vmatprep.mubr.f32.mxu0 %v62
    %811 = vmatmul.mubr.f32.gmra.mxu0 %v61
    %v812 = vpop.f32.mrf.mxu0
    %v813 = vadd.f32 %v556, %v812
    %v814 = vpop.f32.mrf.mxu0
    %v815 = vadd.f32 %v558, %v814
    %816 = vmatprep.mubr.f32.mxu0 %v67
    %817 = vmatmul.mubr.f32.gmra.mxu0 %v66
    %v818 = vpop.f32.mrf.mxu0
    %v819 = vadd.f32 %v562, %v818
    %v820 = vpop.f32.mrf.mxu0
    %v821 = vadd.f32 %v564, %v820
    %822 = vmatprep.mubr.f32.mxu0 %v72
    %823 = vmatmul.mubr.f32.gmra.mxu0 %v71
    %v824 = vpop.f32.mrf.mxu0
    %v825 = vadd.f32 %v568, %v824
    %v826 = vpop.f32.mrf.mxu0
    %v827 = vadd.f32 %v570, %v826
    %828 = vmatprep.mubr.f32.mxu0 %v77
    %829 = vmatmul.mubr.f32.gmra.mxu0 %v76
    %v830 = vpop.f32.mrf.mxu0
    %v831 = vadd.f32 %v574, %v830
    %v832 = vpop.f32.mrf.mxu0
    %v833 = vadd.f32 %v576, %v832
    %834 = vmatprep.mubr.f32.mxu0 %v82
    %835 = vmatmul.mubr.f32.gmra.mxu0 %v81
    %v836 = vpop.f32.mrf.mxu0
    %v837 = vadd.f32 %v580, %v836
    %v838 = vpop.f32.mrf.mxu0
    %v839 = vadd.f32 %v582, %v838
    %840 = vmatprep.mubr.f32.mxu0 %v87
    %841 = vmatmul.mubr.f32.gmra.mxu0 %v86
    %v842 = vpop.f32.mrf.mxu0
    %v843 = vadd.f32 %v586, %v842
    %v844 = vpop.f32.mrf.mxu0
    %v845 = vadd.f32 %v588, %v844
    %846 = vmatprep.mubr.f32.mxu0 %v92
    %847 = vmatmul.mubr.f32.gmra.mxu0 %v91
    %v848 = vpop.f32.mrf.mxu0
    %v849 = vadd.f32 %v592, %v848
    %v850 = vpop.f32.mrf.mxu0
    %v851 = vadd.f32 %v594, %v850
    %852 = vmatprep.mubr.f32.mxu0 %v97
    %853 = vmatmul.mubr.f32.gmra.mxu0 %v96
    %v854 = vpop.f32.mrf.mxu0
    %v855 = vadd.f32 %v598, %v854
    %v856 = vpop.f32.mrf.mxu0
    %v857 = vadd.f32 %v600, %v856
    %858 = vmatprep.mubr.f32.mxu0 %v102
    %859 = vmatmul.mubr.f32.gmra.mxu0 %v101
    %v860 = vpop.f32.mrf.mxu0
    %v861 = vadd.f32 %v604, %v860
    %v862 = vpop.f32.mrf.mxu0
    %v863 = vadd.f32 %v606, %v862
    %864 = vmatprep.mubr.f32.mxu0 %v107
    %865 = vmatmul.mubr.f32.gmra.mxu0 %v106
    %v866 = vpop.f32.mrf.mxu0
    %v867 = vadd.f32 %v610, %v866
    %v868 = vpop.f32.mrf.mxu0
    %v869 = vadd.f32 %v612, %v868
    %870 = vmatprep.mubr.f32.mxu0 %v112
    %871 = vmatmul.mubr.f32.gmra.mxu0 %v111
    %v872 = vpop.f32.mrf.mxu0
    %v873 = vadd.f32 %v616, %v872
    %v874 = vpop.f32.mrf.mxu0
    %v875 = vadd.f32 %v618, %v874
    %876 = vmatprep.mubr.f32.mxu0 %v117
    %877 = vmatmul.mubr.f32.gmra.mxu0 %v116
    %v878 = vpop.f32.mrf.mxu0
    %v879 = vadd.f32 %v622, %v878
    %v880 = vpop.f32.mrf.mxu0
    %v881 = vadd.f32 %v624, %v880
    %882 = vmatprep.mubr.f32.mxu0 %v122
    %883 = vmatmul.mubr.f32.gmra.mxu0 %v121
    %v884 = vpop.f32.mrf.mxu0
    %v885 = vadd.f32 %v628, %v884
    %v886 = vpop.f32.mrf.mxu0
    %v887 = vadd.f32 %v630, %v886
    %888 = vmatprep.mubr.f32.mxu0 %v127
    %889 = vmatmul.mubr.f32.gmra.mxu0 %v126
    %v890 = vpop.f32.mrf.mxu0
    %v891 = vadd.f32 %v634, %v890
    %v892 = vpop.f32.mrf.mxu0
    %v893 = vadd.f32 %v636, %v892
    %894 = vmatprep.mubr.f32.mxu0 %v132
    %895 = vmatmul.mubr.f32.gmra.mxu0 %v131
    %v896 = vpop.f32.mrf.mxu0
    %v897 = vadd.f32 %v640, %v896
    %v898 = vpop.f32.mrf.mxu0
    %v899 = vadd.f32 %v642, %v898
    %900 = vmatprep.mubr.f32.mxu0 %v137
    %901 = vmatmul.mubr.f32.gmra.mxu0 %v136
    %v902 = vpop.f32.mrf.mxu0
    %v903 = vadd.f32 %v646, %v902
    %v904 = vpop.f32.mrf.mxu0
    %v905 = vadd.f32 %v648, %v904
    %906 = vmatprep.mubr.f32.mxu0 %v142
    %907 = vmatmul.mubr.f32.gmra.mxu0 %v141
    %v908 = vpop.f32.mrf.mxu0
    %v909 = vadd.f32 %v652, %v908
    %v910 = vpop.f32.mrf.mxu0
    %v911 = vadd.f32 %v654, %v910
    %912 = vmatprep.mubr.f32.mxu0 %v147
    %913 = vmatmul.mubr.f32.gmra.mxu0 %v146
    %v914 = vpop.f32.mrf.mxu0
    %v915 = vadd.f32 %v658, %v914
    %v916 = vpop.f32.mrf.mxu0
    %v917 = vadd.f32 %v660, %v916
    %918 = vmatprep.mubr.f32.mxu0 %v152
    %919 = vmatmul.mubr.f32.gmra.mxu0 %v151
    %v920 = vpop.f32.mrf.mxu0
    %v921 = vadd.f32 %v664, %v920
    %v922 = vpop.f32.mrf.mxu0
    %v923 = vadd.f32 %v666, %v922
    %924 = vmatprep.mubr.f32.mxu0 %v157
    %925 = vmatmul.mubr.f32.gmra.mxu0 %v156
    %v926 = vpop.f32.mrf.mxu0
    %v927 = vadd.f32 %v670, %v926
    %v928 = vpop.f32.mrf.mxu0
    %v929 = vadd.f32 %v672, %v928
    %930 = vmatprep.mubr.f32.mxu0 %v162
    %931 = vmatmul.mubr.f32.gmra.mxu0 %v161
    %v932 = vpop.f32.mrf.mxu0
    %v933 = vadd.f32 %v676, %v932
    %v934 = vpop.f32.mrf.mxu0
    %v935 = vadd.f32 %v678, %v934
    %936 = vmatprep.mubr.f32.mxu0 %v167
    %937 = vmatmul.mubr.f32.gmra.mxu0 %v166
    %v938 = vpop.f32.mrf.mxu0
    %v939 = vadd.f32 %v682, %v938
    %v940 = vpop.f32.mrf.mxu0
    %v941 = vadd.f32 %v684, %v940
    %942 = vmatprep.mubr.f32.mxu0 %v172
    %943 = vmatmul.mubr.f32.gmra.mxu0 %v171
    %v944 = vpop.f32.mrf.mxu0
    %v945 = vadd.f32 %v688, %v944
    %v946 = vpop.f32.mrf.mxu0
    %v947 = vadd.f32 %v690, %v946
    %948 = vmatprep.mubr.f32.mxu0 %v177
    %949 = vmatmul.mubr.f32.gmra.mxu0 %v176
    %v950 = vpop.f32.mrf.mxu0
    %v951 = vadd.f32 %v694, %v950
    %v952 = vpop.f32.mrf.mxu0
    %v953 = vadd.f32 %v696, %v952
    %954 = vmatprep.mubr.f32.mxu0 %v182
    %955 = vmatmul.mubr.f32.gmra.mxu0 %v181
    %v956 = vpop.f32.mrf.mxu0
    %v957 = vadd.f32 %v700, %v956
    %v958 = vpop.f32.mrf.mxu0
    %v959 = vadd.f32 %v702, %v958
    %960 = vmatprep.mubr.f32.mxu0 %v187
    %961 = vmatmul.mubr.f32.gmra.mxu0 %v186
    %v962 = vpop.f32.mrf.mxu0
    %v963 = vadd.f32 %v706, %v962
    %v964 = vpop.f32.mrf.mxu0
    %v965 = vadd.f32 %v708, %v964
    %966 = vdwg.mxu0
    %967 = vmatprep.subr.mxu0 0.0
    %968 = vmatpush1.msra.mxu0 0.0
    %969 = vmatprep.subr.mxu0 0.0
    %970 = vmatpush1.msra.mxu0 0.0
    %971 = vmatprep.subr.mxu0 0.0
    %972 = vmatpush1.msra.mxu0 0.0
    %973 = vmatprep.subr.mxu0 0.0
    %974 = vmatpush1.msra.mxu0 0.0
    %975 = vmatprep.subr.mxu0 0.0
    %976 = vmatpush1.msra.mxu0 0.0
    %977 = vmatprep.subr.mxu0 0.0
    %978 = vmatpush1.msra.mxu0 0.0
    %979 = vmatprep.subr.mxu0 %v451
    %980 = vmatpush1.msra.mxu0 %v448
    %981 = vmatprep.subr.mxu0 %v334
    %982 = vmatpush1.msra.mxu0 %v333
    %983 = vmatprep.subr.mxu0 %v332
    %984 = vmatpush1.msra.mxu0 %v331
    %985 = vmatprep.subr.mxu0 %v330
    %986 = vmatpush1.msra.mxu0 %v329
    %987 = vmatprep.subr.mxu0 %v328
    %988 = vmatpush1.msra.mxu0 %v327
    %989 = vmatprep.subr.mxu0 %v326
    %990 = vmatpush1.msra.mxu0 %v325
    %991 = vmatprep.subr.mxu0 %v324
    %992 = vmatpush1.msra.mxu0 %v323
    %993 = vmatprep.subr.mxu0 %v322
    %994 = vmatpush1.msra.mxu0 %v321
    %995 = vmatprep.subr.mxu0 %v320
    %996 = vmatpush1.msra.mxu0 %v319
    %997 = vmatprep.subr.mxu0 %v318
    %998 = vmatpush1.msra.mxu0 %v317
    %999 = vmatprep.subr.mxu0 0.0
    %1000 = vmatpush2.msra.mxu0 0.0
    %1001 = vmatprep.subr.mxu0 0.0
    %1002 = vmatpush2.msra.mxu0 0.0
    %1003 = vmatprep.subr.mxu0 0.0
    %1004 = vmatpush2.msra.mxu0 0.0
    %1005 = vmatprep.subr.mxu0 0.0
    %1006 = vmatpush2.msra.mxu0 0.0
    %1007 = vmatprep.subr.mxu0 0.0
    %1008 = vmatpush2.msra.mxu0 0.0
    %1009 = vmatprep.subr.mxu0 0.0
    %1010 = vmatpush2.msra.mxu0 0.0
    %1011 = vmatprep.subr.mxu0 0.0
    %1012 = vmatpush2.msra.mxu0 0.0
    %1013 = vmatprep.subr.mxu0 0.0
    %1014 = vmatpush2.msra.mxu0 0.0
    %1015 = vmatprep.subr.mxu0 0.0
    %1016 = vmatpush2.msra.mxu0 0.0
    %1017 = vmatprep.subr.mxu0 0.0
    %1018 = vmatpush2.msra.mxu0 0.0
    %1019 = vmatprep.subr.mxu0 0.0
    %1020 = vmatpush2.msra.mxu0 0.0
    %1021 = vmatprep.subr.mxu0 0.0
    %1022 = vmatpush2.msra.mxu0 0.0
    %1023 = vmatprep.subr.mxu0 0.0
    %1024 = vmatpush2.msra.mxu0 0.0
    %1025 = vmatprep.subr.mxu0 0.0
    %1026 = vmatpush2.msra.mxu0 0.0
    %1027 = vmatprep.subr.mxu0 0.0
    %1028 = vmatpush2.msra.mxu0 0.0
    %1029 = vmatprep.subr.mxu0 0.0
    %1030 = vmatpush2.msra.mxu0 0.0
    %1031 = vmatprep.mubr.f32.mxu0 0.0
    %1032 = vmatmul.mubr.f32.gmra.mxu0 %v351
    %v1033 = vpop.f32.mrf.mxu0
    %v1034 = vadd.f32 %v777, %v1033
    %v1035 = vpop.f32.mrf.mxu0
    %v1036 = vadd.f32 %v779, %v1035
    %1037 = vmatprep.mubr.f32.mxu0 0.0
    %1038 = vmatmul.mubr.f32.gmra.mxu0 %v354
    %v1039 = vpop.f32.mrf.mxu0
    %v1040 = vadd.f32 %v783, %v1039
    %v1041 = vpop.f32.mrf.mxu0
    %v1042 = vadd.f32 %v785, %v1041
    %1043 = vmatprep.mubr.f32.mxu0 0.0
    %1044 = vmatmul.mubr.f32.gmra.mxu0 %v357
    %v1045 = vpop.f32.mrf.mxu0
    %v1046 = vadd.f32 %v789, %v1045
    %v1047 = vpop.f32.mrf.mxu0
    %v1048 = vadd.f32 %v791, %v1047
    %1049 = vmatprep.mubr.f32.mxu0 0.0
    %1050 = vmatmul.mubr.f32.gmra.mxu0 %v360
    %v1051 = vpop.f32.mrf.mxu0
    %v1052 = vadd.f32 %v795, %v1051
    %v1053 = vpop.f32.mrf.mxu0
    %v1054 = vadd.f32 %v797, %v1053
    %1055 = vmatprep.mubr.f32.mxu0 0.0
    %1056 = vmatmul.mubr.f32.gmra.mxu0 %v363
    %v1057 = vpop.f32.mrf.mxu0
    %v1058 = vadd.f32 %v801, %v1057
    %v1059 = vpop.f32.mrf.mxu0
    %v1060 = vadd.f32 %v803, %v1059
    %1061 = vmatprep.mubr.f32.mxu0 0.0
    %1062 = vmatmul.mubr.f32.gmra.mxu0 %v366
    %v1063 = vpop.f32.mrf.mxu0
    %v1064 = vadd.f32 %v807, %v1063
    %v1065 = vpop.f32.mrf.mxu0
    %v1066 = vadd.f32 %v809, %v1065
    %1067 = vmatprep.mubr.f32.mxu0 0.0
    %1068 = vmatmul.mubr.f32.gmra.mxu0 %v369
    %v1069 = vpop.f32.mrf.mxu0
    %v1070 = vadd.f32 %v813, %v1069
    %v1071 = vpop.f32.mrf.mxu0
    %v1072 = vadd.f32 %v815, %v1071
    %1073 = vmatprep.mubr.f32.mxu0 0.0
    %1074 = vmatmul.mubr.f32.gmra.mxu0 %v372
    %v1075 = vpop.f32.mrf.mxu0
    %v1076 = vadd.f32 %v819, %v1075
    %v1077 = vpop.f32.mrf.mxu0
    %v1078 = vadd.f32 %v821, %v1077
    %1079 = vmatprep.mubr.f32.mxu0 0.0
    %1080 = vmatmul.mubr.f32.gmra.mxu0 %v375
    %v1081 = vpop.f32.mrf.mxu0
    %v1082 = vadd.f32 %v825, %v1081
    %v1083 = vpop.f32.mrf.mxu0
    %v1084 = vadd.f32 %v827, %v1083
    %1085 = vmatprep.mubr.f32.mxu0 0.0
    %1086 = vmatmul.mubr.f32.gmra.mxu0 %v378
    %v1087 = vpop.f32.mrf.mxu0
    %v1088 = vadd.f32 %v831, %v1087
    %v1089 = vpop.f32.mrf.mxu0
    %v1090 = vadd.f32 %v833, %v1089
    %1091 = vmatprep.mubr.f32.mxu0 0.0
    %1092 = vmatmul.mubr.f32.gmra.mxu0 %v381
    %v1093 = vpop.f32.mrf.mxu0
    %v1094 = vadd.f32 %v837, %v1093
    %v1095 = vpop.f32.mrf.mxu0
    %v1096 = vadd.f32 %v839, %v1095
    %1097 = vmatprep.mubr.f32.mxu0 0.0
    %1098 = vmatmul.mubr.f32.gmra.mxu0 %v384
    %v1099 = vpop.f32.mrf.mxu0
    %v1100 = vadd.f32 %v843, %v1099
    %v1101 = vpop.f32.mrf.mxu0
    %v1102 = vadd.f32 %v845, %v1101
    %1103 = vmatprep.mubr.f32.mxu0 0.0
    %1104 = vmatmul.mubr.f32.gmra.mxu0 %v387
    %v1105 = vpop.f32.mrf.mxu0
    %v1106 = vadd.f32 %v849, %v1105
    %v1107 = vpop.f32.mrf.mxu0
    %v1108 = vadd.f32 %v851, %v1107
    %1109 = vmatprep.mubr.f32.mxu0 0.0
    %1110 = vmatmul.mubr.f32.gmra.mxu0 %v390
    %v1111 = vpop.f32.mrf.mxu0
    %v1112 = vadd.f32 %v855, %v1111
    %v1113 = vpop.f32.mrf.mxu0
    %v1114 = vadd.f32 %v857, %v1113
    %1115 = vmatprep.mubr.f32.mxu0 0.0
    %1116 = vmatmul.mubr.f32.gmra.mxu0 %v393
    %v1117 = vpop.f32.mrf.mxu0
    %v1118 = vadd.f32 %v861, %v1117
    %v1119 = vpop.f32.mrf.mxu0
    %v1120 = vadd.f32 %v863, %v1119
    %1121 = vmatprep.mubr.f32.mxu0 0.0
    %1122 = vmatmul.mubr.f32.gmra.mxu0 %v396
    %v1123 = vpop.f32.mrf.mxu0
    %v1124 = vadd.f32 %v867, %v1123
    %v1125 = vpop.f32.mrf.mxu0
    %v1126 = vadd.f32 %v869, %v1125
    %1127 = vmatprep.mubr.f32.mxu0 0.0
    %1128 = vmatmul.mubr.f32.gmra.mxu0 %v399
    %v1129 = vpop.f32.mrf.mxu0
    %v1130 = vadd.f32 %v873, %v1129
    %v1131 = vpop.f32.mrf.mxu0
    %v1132 = vadd.f32 %v875, %v1131
    %1133 = vmatprep.mubr.f32.mxu0 0.0
    %1134 = vmatmul.mubr.f32.gmra.mxu0 %v402
    %v1135 = vpop.f32.mrf.mxu0
    %v1136 = vadd.f32 %v879, %v1135
    %v1137 = vpop.f32.mrf.mxu0
    %v1138 = vadd.f32 %v881, %v1137
    %1139 = vmatprep.mubr.f32.mxu0 0.0
    %1140 = vmatmul.mubr.f32.gmra.mxu0 %v405
    %v1141 = vpop.f32.mrf.mxu0
    %v1142 = vadd.f32 %v885, %v1141
    %v1143 = vpop.f32.mrf.mxu0
    %v1144 = vadd.f32 %v887, %v1143
    %1145 = vmatprep.mubr.f32.mxu0 0.0
    %1146 = vmatmul.mubr.f32.gmra.mxu0 %v408
    %v1147 = vpop.f32.mrf.mxu0
    %v1148 = vadd.f32 %v891, %v1147
    %v1149 = vpop.f32.mrf.mxu0
    %v1150 = vadd.f32 %v893, %v1149
    %1151 = vmatprep.mubr.f32.mxu0 0.0
    %1152 = vmatmul.mubr.f32.gmra.mxu0 %v411
    %v1153 = vpop.f32.mrf.mxu0
    %v1154 = vadd.f32 %v897, %v1153
    %v1155 = vpop.f32.mrf.mxu0
    %v1156 = vadd.f32 %v899, %v1155
    %1157 = vmatprep.mubr.f32.mxu0 0.0
    %1158 = vmatmul.mubr.f32.gmra.mxu0 %v414
    %v1159 = vpop.f32.mrf.mxu0
    %v1160 = vadd.f32 %v903, %v1159
    %v1161 = vpop.f32.mrf.mxu0
    %v1162 = vadd.f32 %v905, %v1161
    %1163 = vmatprep.mubr.f32.mxu0 0.0
    %1164 = vmatmul.mubr.f32.gmra.mxu0 %v417
    %v1165 = vpop.f32.mrf.mxu0
    %v1166 = vadd.f32 %v909, %v1165
    %v1167 = vpop.f32.mrf.mxu0
    %v1168 = vadd.f32 %v911, %v1167
    %1169 = vmatprep.mubr.f32.mxu0 0.0
    %1170 = vmatmul.mubr.f32.gmra.mxu0 %v420
    %v1171 = vpop.f32.mrf.mxu0
    %v1172 = vadd.f32 %v915, %v1171
    %v1173 = vpop.f32.mrf.mxu0
    %v1174 = vadd.f32 %v917, %v1173
    %1175 = vmatprep.mubr.f32.mxu0 0.0
    %1176 = vmatmul.mubr.f32.gmra.mxu0 %v423
    %v1177 = vpop.f32.mrf.mxu0
    %v1178 = vadd.f32 %v921, %v1177
    %v1179 = vpop.f32.mrf.mxu0
    %v1180 = vadd.f32 %v923, %v1179
    %1181 = vmatprep.mubr.f32.mxu0 0.0
    %1182 = vmatmul.mubr.f32.gmra.mxu0 %v426
    %v1183 = vpop.f32.mrf.mxu0
    %v1184 = vadd.f32 %v927, %v1183
    %v1185 = vpop.f32.mrf.mxu0
    %v1186 = vadd.f32 %v929, %v1185
    %1187 = vmatprep.mubr.f32.mxu0 0.0
    %1188 = vmatmul.mubr.f32.gmra.mxu0 %v429
    %v1189 = vpop.f32.mrf.mxu0
    %v1190 = vadd.f32 %v933, %v1189
    %v1191 = vpop.f32.mrf.mxu0
    %v1192 = vadd.f32 %v935, %v1191
    %1193 = vmatprep.mubr.f32.mxu0 0.0
    %1194 = vmatmul.mubr.f32.gmra.mxu0 %v432
    %v1195 = vpop.f32.mrf.mxu0
    %v1196 = vadd.f32 %v939, %v1195
    %v1197 = vpop.f32.mrf.mxu0
    %v1198 = vadd.f32 %v941, %v1197
    %1199 = vmatprep.mubr.f32.mxu0 0.0
    %1200 = vmatmul.mubr.f32.gmra.mxu0 %v435
    %v1201 = vpop.f32.mrf.mxu0
    %v1202 = vadd.f32 %v945, %v1201
    %v1203 = vpop.f32.mrf.mxu0
    %v1204 = vadd.f32 %v947, %v1203
    %1205 = vmatprep.mubr.f32.mxu0 0.0
    %1206 = vmatmul.mubr.f32.gmra.mxu0 %v438
    %v1207 = vpop.f32.mrf.mxu0
    %v1208 = vadd.f32 %v951, %v1207
    %v1209 = vpop.f32.mrf.mxu0
    %v1210 = vadd.f32 %v953, %v1209
    %1211 = vmatprep.mubr.f32.mxu0 0.0
    %1212 = vmatmul.mubr.f32.gmra.mxu0 %v441
    %v1213 = vpop.f32.mrf.mxu0
    %v1214 = vadd.f32 %v957, %v1213
    %v1215 = vpop.f32.mrf.mxu0
    %v1216 = vadd.f32 %v959, %v1215
    %1217 = vmatprep.mubr.f32.mxu0 0.0
    %1218 = vmatmul.mubr.f32.gmra.mxu0 %v444
    %v1219 = vpop.f32.mrf.mxu0
    %v1220 = vadd.f32 %v963, %v1219
    %v1221 = vpop.f32.mrf.mxu0
    %v1222 = vadd.f32 %v965, %v1221
    %1223 = vdwg.mxu0
    %v1224 = vmax.f32 %v1034, 0.0
    %v1225 = vmax.f32 %v1036, 0.0
    %v1226 = vmax.f32 %v1040, 0.0
    %v1227 = vmax.f32 %v1042, 0.0
    %v1228 = vmax.f32 %v1046, 0.0
    %v1229 = vmax.f32 %v1048, 0.0
    %v1230 = vmax.f32 %v1052, 0.0
    %v1231 = vmax.f32 %v1054, 0.0
    %v1232 = vmax.f32 %v1058, 0.0
    %v1233 = vmax.f32 %v1060, 0.0
    %v1234 = vmax.f32 %v1064, 0.0
    %v1235 = vmax.f32 %v1066, 0.0
    %v1236 = vmax.f32 %v1070, 0.0
    %v1237 = vmax.f32 %v1072, 0.0
    %v1238 = vmax.f32 %v1076, 0.0
    %v1239 = vmax.f32 %v1078, 0.0
    %v1240 = vmax.f32 %v1082, 0.0
    %v1241 = vmax.f32 %v1084, 0.0
    %v1242 = vmax.f32 %v1088, 0.0
    %v1243 = vmax.f32 %v1090, 0.0
    %v1244 = vmax.f32 %v1094, 0.0
    %v1245 = vmax.f32 %v1096, 0.0
    %v1246 = vmax.f32 %v1100, 0.0
    %v1247 = vmax.f32 %v1102, 0.0
    %v1248 = vmax.f32 %v1106, 0.0
    %v1249 = vmax.f32 %v1108, 0.0
    %v1250 = vmax.f32 %v1112, 0.0
    %v1251 = vmax.f32 %v1114, 0.0
    %v1252 = vmax.f32 %v1118, 0.0
    %v1253 = vmax.f32 %v1120, 0.0
    %v1254 = vmax.f32 %v1124, 0.0
    %v1255 = vmax.f32 %v1126, 0.0
    %v1256 = vmax.f32 %v1130, 0.0
    %v1257 = vmax.f32 %v1132, 0.0
    %v1258 = vmax.f32 %v1136, 0.0
    %v1259 = vmax.f32 %v1138, 0.0
    %v1260 = vmax.f32 %v1142, 0.0
    %v1261 = vmax.f32 %v1144, 0.0
    %v1262 = vmax.f32 %v1148, 0.0
    %v1263 = vmax.f32 %v1150, 0.0
    %v1264 = vmax.f32 %v1154, 0.0
    %v1265 = vmax.f32 %v1156, 0.0
    %v1266 = vmax.f32 %v1160, 0.0
    %v1267 = vmax.f32 %v1162, 0.0
    %v1268 = vmax.f32 %v1166, 0.0
    %v1269 = vmax.f32 %v1168, 0.0
    %v1270 = vmax.f32 %v1172, 0.0
    %v1271 = vmax.f32 %v1174, 0.0
    %v1272 = vmax.f32 %v1178, 0.0
    %v1273 = vmax.f32 %v1180, 0.0
    %v1274 = vmax.f32 %v1184, 0.0
    %v1275 = vmax.f32 %v1186, 0.0
    %v1276 = vmax.f32 %v1190, 0.0
    %v1277 = vmax.f32 %v1192, 0.0
    %v1278 = vmax.f32 %v1196, 0.0
    %v1279 = vmax.f32 %v1198, 0.0
    %v1280 = vmax.f32 %v1202, 0.0
    %v1281 = vmax.f32 %v1204, 0.0
    %v1282 = vmax.f32 %v1208, 0.0
    %v1283 = vmax.f32 %v1210, 0.0
    %v1284 = vmax.f32 %v1214, 0.0
    %v1285 = vmax.f32 %v1216, 0.0
    %v1286 = vmax.f32 %v1220, 0.0
    %v1287 = vmax.f32 %v1222, 0.0
    %v1288 = vld [vmem:[%s3] sm:$0xff]
    %v1289 = vld [vmem:[%s3 + $0x8] sm:$0xff]
    %v1290 = vld [vmem:[%s3 + $0x10] sm:$0xff]
    %v1291 = vld [vmem:[%s3 + $0x18] sm:$0xff]
    %v1292 = vld [vmem:[%s3 + $0x20] sm:$0xff]
    %v1293 = vld [vmem:[%s3 + $0x28] sm:$0xff]
    %v1294 = vld [vmem:[%s3 + $0x30] sm:$0xff]
    %v1295 = vld [vmem:[%s3 + $0x38] sm:$0xff]
    %v1296 = vld [vmem:[%s3 + $0x40] sm:$0xff]
    %v1297 = vld [vmem:[%s3 + $0x48] sm:$0xff]
    %v1298 = vld [vmem:[%s3 + $0x50] sm:$0xff]
    %v1299 = vld [vmem:[%s3 + $0x58] sm:$0xff]
    %v1300 = vld [vmem:[%s3 + $0x60] sm:$0xff]
    %v1301 = vld [vmem:[%s3 + $0x68] sm:$0xff]
    %v1302 = vld [vmem:[%s3 + $0x70] sm:$0xff]
    %v1303 = vld [vmem:[%s3 + $0x78] sm:$0xff]
    %v1304 = vld [vmem:[%s3 + $0x80] sm:$0xff]
    %v1305 = vld [vmem:[%s3 + $0x88] sm:$0xff]
    %v1306 = vld [vmem:[%s3 + $0x90] sm:$0xff]
    %v1307 = vld [vmem:[%s3 + $0x98] sm:$0xff]
    %v1308 = vld [vmem:[%s3 + $0xa0] sm:$0xff]
    %v1309 = vld [vmem:[%s3 + $0xa8] sm:$0xff]
    %v1310 = vld [vmem:[%s3 + $0xb0] sm:$0xff]
    %v1311 = vld [vmem:[%s3 + $0xb8] sm:$0xff]
    %v1312 = vld [vmem:[%s3 + $0xc0] sm:$0xff]
    %v1313 = vld [vmem:[%s3 + $0xc8] sm:$0xff]
    %v1314 = vld [vmem:[%s3 + $0xd0] sm:$0xff]
    %v1315 = vld [vmem:[%s3 + $0xd8] sm:$0xff]
    %v1316 = vld [vmem:[%s3 + $0xe0] sm:$0xff]
    %v1317 = vld [vmem:[%s3 + $0xe8] sm:$0xff]
    %v1318 = vld [vmem:[%s3 + $0xf0] sm:$0xff]
    %v1319 = vld [vmem:[%s3 + $0xf8] sm:$0xff]
    %v1320 = vld [vmem:[%s4] sm:$0xff]
    %v1321 = vld [vmem:[%s4 + $0x8] sm:$0xff]
    %v1322 = vld [vmem:[%s4 + $0x10] sm:$0xff]
    %v1323 = vld [vmem:[%s4 + $0x18] sm:$0xff]
    %v1324 = vld [vmem:[%s4 + $0x20] sm:$0xff]
    %v1325 = vld [vmem:[%s4 + $0x28] sm:$0xff]
    %v1326 = vld [vmem:[%s4 + $0x30] sm:$0xff]
    %v1327 = vld [vmem:[%s4 + $0x38] sm:$0xff]
    %v1328 = vld [vmem:[%s4 + $0x40] sm:$0xff]
    %v1329 = vld [vmem:[%s4 + $0x48] sm:$0xff]
    %v1330 = vld [vmem:[%s4 + $0x50] sm:$0xff]
    %v1331 = vld [vmem:[%s4 + $0x58] sm:$0xff]
    %v1332 = vld [vmem:[%s4 + $0x60] sm:$0xff]
    %v1333 = vld [vmem:[%s4 + $0x68] sm:$0xff]
    %v1334 = vld [vmem:[%s4 + $0x70] sm:$0xff]
    %v1335 = vld [vmem:[%s4 + $0x78] sm:$0xff]
    %1337 = vset.pattern.permute.xlu0 0
    %1338 = vperm.xlu0 %1337, %v1320
    %v1339 = vpop.permute.xlu0 %1338
    %1342 = vset.pattern.permute.xlu0 0
    %1343 = vperm.xlu0 %1342, %v1321
    %v1344 = vpop.permute.xlu0 %1343
    %1347 = vset.pattern.permute.xlu0 0
    %1348 = vperm.xlu0 %1347, %v1322
    %v1349 = vpop.permute.xlu0 %1348
    %1352 = vset.pattern.permute.xlu0 0
    %1353 = vperm.xlu0 %1352, %v1323
    %v1354 = vpop.permute.xlu0 %1353
    %1357 = vset.pattern.permute.xlu0 0
    %1358 = vperm.xlu0 %1357, %v1324
    %v1359 = vpop.permute.xlu0 %1358
    %1362 = vset.pattern.permute.xlu0 0
    %1363 = vperm.xlu0 %1362, %v1325
    %v1364 = vpop.permute.xlu0 %1363
    %1367 = vset.pattern.permute.xlu0 0
    %1368 = vperm.xlu0 %1367, %v1326
    %v1369 = vpop.permute.xlu0 %1368
    %1372 = vset.pattern.permute.xlu0 0
    %1373 = vperm.xlu0 %1372, %v1327
    %v1374 = vpop.permute.xlu0 %1373
    %1377 = vset.pattern.permute.xlu0 0
    %1378 = vperm.xlu0 %1377, %v1328
    %v1379 = vpop.permute.xlu0 %1378
    %1382 = vset.pattern.permute.xlu0 0
    %1383 = vperm.xlu0 %1382, %v1329
    %v1384 = vpop.permute.xlu0 %1383
    %1387 = vset.pattern.permute.xlu0 0
    %1388 = vperm.xlu0 %1387, %v1330
    %v1389 = vpop.permute.xlu0 %1388
    %1392 = vset.pattern.permute.xlu0 0
    %1393 = vperm.xlu0 %1392, %v1331
    %v1394 = vpop.permute.xlu0 %1393
    %1397 = vset.pattern.permute.xlu0 0
    %1398 = vperm.xlu0 %1397, %v1332
    %v1399 = vpop.permute.xlu0 %1398
    %1402 = vset.pattern.permute.xlu0 0
    %1403 = vperm.xlu0 %1402, %v1333
    %v1404 = vpop.permute.xlu0 %1403
    %1407 = vset.pattern.permute.xlu0 0
    %1408 = vperm.xlu0 %1407, %v1334
    %v1409 = vpop.permute.xlu0 %1408
    %1412 = vset.pattern.permute.xlu0 0
    %1413 = vperm.xlu0 %1412, %v1335
    %v1414 = vpop.permute.xlu0 %1413
    %1416 = vmatprep.subr.mxu0 %v1255
    %1417 = vmatpush1.xpose.msra.mxu0 %v1254
    %1418 = vmatprep.subr.mxu0 %v1253
    %1419 = vmatpush1.xpose.msra.mxu0 %v1252
    %1420 = vmatprep.subr.mxu0 %v1251
    %1421 = vmatpush1.xpose.msra.mxu0 %v1250
    %1422 = vmatprep.subr.mxu0 %v1249
    %1423 = vmatpush1.xpose.msra.mxu0 %v1248
    %1424 = vmatprep.subr.mxu0 %v1247
    %1425 = vmatpush1.xpose.msra.mxu0 %v1246
    %1426 = vmatprep.subr.mxu0 %v1245
    %1427 = vmatpush1.xpose.msra.mxu0 %v1244
    %1428 = vmatprep.subr.mxu0 %v1243
    %1429 = vmatpush1.xpose.msra.mxu0 %v1242
    %1430 = vmatprep.subr.mxu0 %v1241
    %1431 = vmatpush1.xpose.msra.mxu0 %v1240
    %1432 = vmatprep.subr.mxu0 %v1239
    %1433 = vmatpush1.xpose.msra.mxu0 %v1238
    %1434 = vmatprep.subr.mxu0 %v1237
    %1435 = vmatpush1.xpose.msra.mxu0 %v1236
    %1436 = vmatprep.subr.mxu0 %v1235
    %1437 = vmatpush1.xpose.msra.mxu0 %v1234
    %1438 = vmatprep.subr.mxu0 %v1233
    %1439 = vmatpush1.xpose.msra.mxu0 %v1232
    %1440 = vmatprep.subr.mxu0 %v1231
    %1441 = vmatpush1.xpose.msra.mxu0 %v1230
    %1442 = vmatprep.subr.mxu0 %v1229
    %1443 = vmatpush1.xpose.msra.mxu0 %v1228
    %1444 = vmatprep.subr.mxu0 %v1227
    %1445 = vmatpush1.xpose.msra.mxu0 %v1226
    %1446 = vmatprep.subr.mxu0 %v1225
    %1447 = vmatpush1.xpose.msra.mxu0 %v1224
    %1448 = vmatprep.subr.mxu0 %v1287
    %1449 = vmatpush2.xpose.msra.mxu0 %v1286
    %1450 = vmatprep.subr.mxu0 %v1285
    %1451 = vmatpush2.xpose.msra.mxu0 %v1284
    %1452 = vmatprep.subr.mxu0 %v1283
    %1453 = vmatpush2.xpose.msra.mxu0 %v1282
    %1454 = vmatprep.subr.mxu0 %v1281
    %1455 = vmatpush2.xpose.msra.mxu0 %v1280
    %1456 = vmatprep.subr.mxu0 %v1279
    %1457 = vmatpush2.xpose.msra.mxu0 %v1278
    %1458 = vmatprep.subr.mxu0 %v1277
    %1459 = vmatpush2.xpose.msra.mxu0 %v1276
    %1460 = vmatprep.subr.mxu0 %v1275
    %1461 = vmatpush2.xpose.msra.mxu0 %v1274
    %1462 = vmatprep.subr.mxu0 %v1273
    %1463 = vmatpush2.xpose.msra.mxu0 %v1272
    %1464 = vmatprep.subr.mxu0 %v1271
    %1465 = vmatpush2.xpose.msra.mxu0 %v1270
    %1466 = vmatprep.subr.mxu0 %v1269
    %1467 = vmatpush2.xpose.msra.mxu0 %v1268
    %1468 = vmatprep.subr.mxu0 %v1267
    %1469 = vmatpush2.xpose.msra.mxu0 %v1266
    %1470 = vmatprep.subr.mxu0 %v1265
    %1471 = vmatpush2.xpose.msra.mxu0 %v1264
    %1472 = vmatprep.subr.mxu0 %v1263
    %1473 = vmatpush2.xpose.msra.mxu0 %v1262
    %1474 = vmatprep.subr.mxu0 %v1261
    %1475 = vmatpush2.xpose.msra.mxu0 %v1260
    %1476 = vmatprep.subr.mxu0 %v1259
    %1477 = vmatpush2.xpose.msra.mxu0 %v1258
    %1478 = vmatprep.subr.mxu0 %v1257
    %1479 = vmatpush2.xpose.msra.mxu0 %v1256
    %1480 = vmatprep.mubr.f32.mxu0 %v1289
    %1481 = vmatmul.mubr.f32.gmra.mxu0 %v1288
    %v1482 = vpop.f32.mrf.mxu0
    %v1483 = vadd.f32 %v1339, %v1482
    %v1484 = vpop.f32.mrf.mxu0
    %v1485 = vadd.f32 %v1339, %v1484
    %1486 = vmatprep.mubr.f32.mxu0 %v1291
    %1487 = vmatmul.mubr.f32.gmra.mxu0 %v1290
    %v1488 = vpop.f32.mrf.mxu0
    %v1489 = vadd.f32 %v1344, %v1488
    %v1490 = vpop.f32.mrf.mxu0
    %v1491 = vadd.f32 %v1344, %v1490
    %1492 = vmatprep.mubr.f32.mxu0 %v1293
    %1493 = vmatmul.mubr.f32.gmra.mxu0 %v1292
    %v1494 = vpop.f32.mrf.mxu0
    %v1495 = vadd.f32 %v1349, %v1494
    %v1496 = vpop.f32.mrf.mxu0
    %v1497 = vadd.f32 %v1349, %v1496
    %1498 = vmatprep.mubr.f32.mxu0 %v1295
    %1499 = vmatmul.mubr.f32.gmra.mxu0 %v1294
    %v1500 = vpop.f32.mrf.mxu0
    %v1501 = vadd.f32 %v1354, %v1500
    %v1502 = vpop.f32.mrf.mxu0
    %v1503 = vadd.f32 %v1354, %v1502
    %1504 = vmatprep.mubr.f32.mxu0 %v1297
    %1505 = vmatmul.mubr.f32.gmra.mxu0 %v1296
    %v1506 = vpop.f32.mrf.mxu0
    %v1507 = vadd.f32 %v1359, %v1506
    %v1508 = vpop.f32.mrf.mxu0
    %v1509 = vadd.f32 %v1359, %v1508
    %1510 = vmatprep.mubr.f32.mxu0 %v1299
    %1511 = vmatmul.mubr.f32.gmra.mxu0 %v1298
    %v1512 = vpop.f32.mrf.mxu0
    %v1513 = vadd.f32 %v1364, %v1512
    %v1514 = vpop.f32.mrf.mxu0
    %v1515 = vadd.f32 %v1364, %v1514
    %1516 = vmatprep.mubr.f32.mxu0 %v1301
    %1517 = vmatmul.mubr.f32.gmra.mxu0 %v1300
    %v1518 = vpop.f32.mrf.mxu0
    %v1519 = vadd.f32 %v1369, %v1518
    %v1520 = vpop.f32.mrf.mxu0
    %v1521 = vadd.f32 %v1369, %v1520
    %1522 = vmatprep.mubr.f32.mxu0 %v1303
    %1523 = vmatmul.mubr.f32.gmra.mxu0 %v1302
    %v1524 = vpop.f32.mrf.mxu0
    %v1525 = vadd.f32 %v1374, %v1524
    %v1526 = vpop.f32.mrf.mxu0
    %v1527 = vadd.f32 %v1374, %v1526
    %1528 = vmatprep.mubr.f32.mxu0 %v1305
    %1529 = vmatmul.mubr.f32.gmra.mxu0 %v1304
    %v1530 = vpop.f32.mrf.mxu0
    %v1531 = vadd.f32 %v1379, %v1530
    %v1532 = vpop.f32.mrf.mxu0
    %v1533 = vadd.f32 %v1379, %v1532
    %1534 = vmatprep.mubr.f32.mxu0 %v1307
    %1535 = vmatmul.mubr.f32.gmra.mxu0 %v1306
    %v1536 = vpop.f32.mrf.mxu0
    %v1537 = vadd.f32 %v1384, %v1536
    %v1538 = vpop.f32.mrf.mxu0
    %v1539 = vadd.f32 %v1384, %v1538
    %1540 = vmatprep.mubr.f32.mxu0 %v1309
    %1541 = vmatmul.mubr.f32.gmra.mxu0 %v1308
    %v1542 = vpop.f32.mrf.mxu0
    %v1543 = vadd.f32 %v1389, %v1542
    %v1544 = vpop.f32.mrf.mxu0
    %v1545 = vadd.f32 %v1389, %v1544
    %1546 = vmatprep.mubr.f32.mxu0 %v1311
    %1547 = vmatmul.mubr.f32.gmra.mxu0 %v1310
    %v1548 = vpop.f32.mrf.mxu0
    %v1549 = vadd.f32 %v1394, %v1548
    %v1550 = vpop.f32.mrf.mxu0
    %v1551 = vadd.f32 %v1394, %v1550
    %1552 = vmatprep.mubr.f32.mxu0 %v1313
    %1553 = vmatmul.mubr.f32.gmra.mxu0 %v1312
    %v1554 = vpop.f32.mrf.mxu0
    %v1555 = vadd.f32 %v1399, %v1554
    %v1556 = vpop.f32.mrf.mxu0
    %v1557 = vadd.f32 %v1399, %v1556
    %1558 = vmatprep.mubr.f32.mxu0 %v1315
    %1559 = vmatmul.mubr.f32.gmra.mxu0 %v1314
    %v1560 = vpop.f32.mrf.mxu0
    %v1561 = vadd.f32 %v1404, %v1560
    %v1562 = vpop.f32.mrf.mxu0
    %v1563 = vadd.f32 %v1404, %v1562
    %1564 = vmatprep.mubr.f32.mxu0 %v1317
    %1565 = vmatmul.mubr.f32.gmra.mxu0 %v1316
    %v1566 = vpop.f32.mrf.mxu0
    %v1567 = vadd.f32 %v1409, %v1566
    %v1568 = vpop.f32.mrf.mxu0
    %v1569 = vadd.f32 %v1409, %v1568
    %1570 = vmatprep.mubr.f32.mxu0 %v1319
    %1571 = vmatmul.mubr.f32.gmra.mxu0 %v1318
    %v1572 = vpop.f32.mrf.mxu0
    %v1573 = vadd.f32 %v1414, %v1572
    %v1574 = vpop.f32.mrf.mxu0
    %v1575 = vadd.f32 %v1414, %v1574
    %1576 = vdwg.mxu0
    %v1577 = vmax.f32 %v1483, 0.0
    %v1578 = vmax.f32 %v1485, 0.0
    %v1579 = vmax.f32 %v1489, 0.0
    %v1580 = vmax.f32 %v1491, 0.0
    %v1581 = vmax.f32 %v1495, 0.0
    %v1582 = vmax.f32 %v1497, 0.0
    %v1583 = vmax.f32 %v1501, 0.0
    %v1584 = vmax.f32 %v1503, 0.0
    %v1585 = vmax.f32 %v1507, 0.0
    %v1586 = vmax.f32 %v1509, 0.0
    %v1587 = vmax.f32 %v1513, 0.0
    %v1588 = vmax.f32 %v1515, 0.0
    %v1589 = vmax.f32 %v1519, 0.0
    %v1590 = vmax.f32 %v1521, 0.0
    %v1591 = vmax.f32 %v1525, 0.0
    %v1592 = vmax.f32 %v1527, 0.0
    %v1593 = vmax.f32 %v1531, 0.0
    %v1594 = vmax.f32 %v1533, 0.0
    %v1595 = vmax.f32 %v1537, 0.0
    %v1596 = vmax.f32 %v1539, 0.0
    %v1597 = vmax.f32 %v1543, 0.0
    %v1598 = vmax.f32 %v1545, 0.0
    %v1599 = vmax.f32 %v1549, 0.0
    %v1600 = vmax.f32 %v1551, 0.0
    %v1601 = vmax.f32 %v1555, 0.0
    %v1602 = vmax.f32 %v1557, 0.0
    %v1603 = vmax.f32 %v1561, 0.0
    %v1604 = vmax.f32 %v1563, 0.0
    %v1605 = vmax.f32 %v1567, 0.0
    %v1606 = vmax.f32 %v1569, 0.0
    %v1607 = vmax.f32 %v1573, 0.0
    %v1608 = vmax.f32 %v1575, 0.0
    %v1609 = vld [vmem:[%s5] sm:$0xff]
    %v1610 = vld [vmem:[%s5 + $0x8] sm:$0xff]
    %v1611 = vld [vmem:[%s5 + $0x10] sm:$0xff]
    %v1612 = vld [vmem:[%s5 + $0x18] sm:$0xff]
    %v1613 = vld [vmem:[%s5 + $0x20] sm:$0xff]
    %v1614 = vld [vmem:[%s5 + $0x28] sm:$0xff]
    %v1615 = vld [vmem:[%s5 + $0x30] sm:$0xff]
    %v1616 = vld [vmem:[%s5 + $0x38] sm:$0xff]
    %v1617 = vld [vmem:[%s5 + $0x40] sm:$0xff]
    %v1618 = vld [vmem:[%s5 + $0x48] sm:$0xff]
    %v1619 = vld [vmem:[%s5 + $0x50] sm:$0xff]
    %v1620 = vld [vmem:[%s5 + $0x58] sm:$0xff]
    %v1621 = vld [vmem:[%s5 + $0x60] sm:$0xff]
    %v1622 = vld [vmem:[%s5 + $0x68] sm:$0xff]
    %v1623 = vld [vmem:[%s5 + $0x70] sm:$0xff]
    %v1624 = vld [vmem:[%s5 + $0x78] sm:$0xff]
    %1626 = vset.pattern.permute.xlu0 0
    %1627 = vperm.xlu0 %1626, %v1609
    %v1628 = vpop.permute.xlu0 %1627
    %1631 = vset.pattern.permute.xlu0 0
    %1632 = vperm.xlu0 %1631, %v1610
    %v1633 = vpop.permute.xlu0 %1632
    %1636 = vset.pattern.permute.xlu0 0
    %1637 = vperm.xlu0 %1636, %v1611
    %v1638 = vpop.permute.xlu0 %1637
    %1641 = vset.pattern.permute.xlu0 0
    %1642 = vperm.xlu0 %1641, %v1612
    %v1643 = vpop.permute.xlu0 %1642
    %1646 = vset.pattern.permute.xlu0 0
    %1647 = vperm.xlu0 %1646, %v1613
    %v1648 = vpop.permute.xlu0 %1647
    %1651 = vset.pattern.permute.xlu0 0
    %1652 = vperm.xlu0 %1651, %v1614
    %v1653 = vpop.permute.xlu0 %1652
    %1656 = vset.pattern.permute.xlu0 0
    %1657 = vperm.xlu0 %1656, %v1615
    %v1658 = vpop.permute.xlu0 %1657
    %1661 = vset.pattern.permute.xlu0 0
    %1662 = vperm.xlu0 %1661, %v1616
    %v1663 = vpop.permute.xlu0 %1662
    %1666 = vset.pattern.permute.xlu0 0
    %1667 = vperm.xlu0 %1666, %v1617
    %v1668 = vpop.permute.xlu0 %1667
    %1671 = vset.pattern.permute.xlu0 0
    %1672 = vperm.xlu0 %1671, %v1618
    %v1673 = vpop.permute.xlu0 %1672
    %1676 = vset.pattern.permute.xlu0 0
    %1677 = vperm.xlu0 %1676, %v1619
    %v1678 = vpop.permute.xlu0 %1677
    %1681 = vset.pattern.permute.xlu0 0
    %1682 = vperm.xlu0 %1681, %v1620
    %v1683 = vpop.permute.xlu0 %1682
    %1686 = vset.pattern.permute.xlu0 0
    %1687 = vperm.xlu0 %1686, %v1621
    %v1688 = vpop.permute.xlu0 %1687
    %1691 = vset.pattern.permute.xlu0 0
    %1692 = vperm.xlu0 %1691, %v1622
    %v1693 = vpop.permute.xlu0 %1692
    %1696 = vset.pattern.permute.xlu0 0
    %1697 = vperm.xlu0 %1696, %v1623
    %v1698 = vpop.permute.xlu0 %1697
    %1701 = vset.pattern.permute.xlu0 0
    %1702 = vperm.xlu0 %1701, %v1624
    %v1703 = vpop.permute.xlu0 %1702
    %v1705 = vmul.f32 %v1577, %v1628
    %v1706 = vmul.f32 %v1578, %v1628
    %v1707 = vmul.f32 %v1579, %v1633
    %v1708 = vmul.f32 %v1580, %v1633
    %v1709 = vmul.f32 %v1581, %v1638
    %v1710 = vmul.f32 %v1582, %v1638
    %v1711 = vmul.f32 %v1583, %v1643
    %v1712 = vmul.f32 %v1584, %v1643
    %v1713 = vmul.f32 %v1585, %v1648
    %v1714 = vmul.f32 %v1586, %v1648
    %v1715 = vmul.f32 %v1587, %v1653
    %v1716 = vmul.f32 %v1588, %v1653
    %v1717 = vmul.f32 %v1589, %v1658
    %v1718 = vmul.f32 %v1590, %v1658
    %v1719 = vmul.f32 %v1591, %v1663
    %v1720 = vmul.f32 %v1592, %v1663
    %v1721 = vmul.f32 %v1593, %v1668
    %v1722 = vmul.f32 %v1594, %v1668
    %v1723 = vmul.f32 %v1595, %v1673
    %v1724 = vmul.f32 %v1596, %v1673
    %v1725 = vmul.f32 %v1597, %v1678
    %v1726 = vmul.f32 %v1598, %v1678
    %v1727 = vmul.f32 %v1599, %v1683
    %v1728 = vmul.f32 %v1600, %v1683
    %v1729 = vmul.f32 %v1601, %v1688
    %v1730 = vmul.f32 %v1602, %v1688
    %v1731 = vmul.f32 %v1603, %v1693
    %v1732 = vmul.f32 %v1604, %v1693
    %v1733 = vmul.f32 %v1605, %v1698
    %v1734 = vmul.f32 %v1606, %v1698
    %v1735 = vmul.f32 %v1607, %v1703
    %v1736 = vmul.f32 %v1608, %v1703
    %v1737 = vadd.f32 %v1705, %v1707
    %v1738 = vadd.f32 %v1737, %v1709
    %v1739 = vadd.f32 %v1738, %v1711
    %v1740 = vadd.f32 %v1739, %v1713
    %v1741 = vadd.f32 %v1740, %v1715
    %v1742 = vadd.f32 %v1741, %v1717
    %v1743 = vadd.f32 %v1742, %v1719
    %v1744 = vadd.f32 %v1743, %v1721
    %v1745 = vadd.f32 %v1744, %v1723
    %v1746 = vadd.f32 %v1745, %v1725
    %v1747 = vadd.f32 %v1746, %v1727
    %v1748 = vadd.f32 %v1747, %v1729
    %v1749 = vadd.f32 %v1748, %v1731
    %v1750 = vadd.f32 %v1749, %v1733
    %v1751 = vadd.f32 %v1750, %v1735
    %v1752 = vrot.slane %v1751, 4
    %v1753 = vadd.f32 %v1751, %v1752
    %v1754 = vrot.slane %v1753, 2
    %v1755 = vadd.f32 %v1753, %v1754
    %v1756 = vrot.slane %v1755, 1
    %v1757 = vadd.f32 %v1755, %v1756
    %v1758 = vadd.f32 %v1706, %v1708
    %v1759 = vadd.f32 %v1758, %v1710
    %v1760 = vadd.f32 %v1759, %v1712
    %v1761 = vadd.f32 %v1760, %v1714
    %v1762 = vadd.f32 %v1761, %v1716
    %v1763 = vadd.f32 %v1762, %v1718
    %v1764 = vadd.f32 %v1763, %v1720
    %v1765 = vadd.f32 %v1764, %v1722
    %v1766 = vadd.f32 %v1765, %v1724
    %v1767 = vadd.f32 %v1766, %v1726
    %v1768 = vadd.f32 %v1767, %v1728
    %v1769 = vadd.f32 %v1768, %v1730
    %v1770 = vadd.f32 %v1769, %v1732
    %v1771 = vadd.f32 %v1770, %v1734
    %v1772 = vadd.f32 %v1771, %v1736
    %v1773 = vrot.slane %v1772, 4
    %v1774 = vadd.f32 %v1772, %v1773
    %v1775 = vrot.slane %v1774, 2
    %v1776 = vadd.f32 %v1774, %v1775
    %v1777 = vrot.slane %v1776, 1
    %v1778 = vadd.f32 %v1776, %v1777
    %v1779 = vld [vmem:[#allocation2] sm:$0x1]
    %1781 = vset.pattern.permute.xlu0 0
    %1782 = vperm.xlu0 %1781, %v1779
    %v1783 = vpop.permute.xlu0 %1782
    %v1785 = vlaneseq
    %v1786 = vshrl.u32 %v1785, 7
    %v1787 = vsub.s32 0, %v1786
    %v1788 = vrot.slane %v1783, %v1787
    %v1789 = vadd.f32 %v1757, %v1788
    %v1790 = vadd.f32 %v1778, %v1788
    %v1793 = vcombine.low %v1789, %v1790
    %v1795 = vunpack.c.l.s4 1966171168
    %v1796 = vunpack.c.0.s8 %v1795
    %v1797 = vlaneseq
    %v1798 = vshrl.u32 %v1797, 7
    %v1799 = vsub.s32 %v1796, %v1798
    %v1800 = vrot.slane %v1793, %v1799
    %v1802 = vunpack.c.l.s4 1966171168
    %v1803 = vunpack.c.0.s8 %v1802
    %v1804 = vlaneseq
    %v1805 = vshrl.u32 %v1804, 7
    %v1806 = vsub.s32 %v1803, %v1805
    %v1807 = vrot.slane %v1800, %v1806
    %v1809 = vlaneseq
    %vm1810 = vcmp.ge.s32.totalorder %v1809, 0
    %vm1811 = vcmp.lt.s32.totalorder %v1809, 256
    %vm1812 = vmand %vm1810, %vm1811
    %1813 = vst.msk [vmem:[#allocation3] sm:$0x3] %vm1812, %v1807
    // Predicated region
    $region30: #{tpu_custom_call.1} parent=1 // pred_check
      _
    $region31: #{tpu_custom_call.1} parent=1 // pred_check_branch
      %1815 = sbr.rel (0) target = $region33
    $region32: #{tpu_custom_call.1} parent=1 // pred_region
      %s1817 = ssub.s32 32, 32
      %1818 = vsyncadd [#allocation4], %s1817
      %s1820 = sshll.u32 [#allocation3], 4
      %s1821 = int_to_ptr.vmem [resolvable:$true] %s1820
      %1823 = dma.vmem_to_hbm [thread:$0]  %s1821, 32, %s7, [#allocation4]
    $region33: #{tpu_custom_call.1} parent=1 // pred_fallthru
      _
    // Predicated region
    $region34: #{tpu_custom_call.1} parent=1 // pred_check
      _
    $region35: #{tpu_custom_call.1} parent=1 // pred_check_branch
      %1825 = sbr.rel (0) target = $region37
    $region36: #{tpu_custom_call.1} parent=1 // pred_region
      %1826 = dma.done [#allocation4], 32
    $region37: #{tpu_custom_call.1} parent=1 // pred_fallthru
      _
    %1827 = vsyncpa [#allocation4], 1

</llo_original>
